<compile_context>
chip_gen: v7x
topology: tpu7x:2x2x1
jax: 0.10.0
libtpu: 0.0.40
codegen_flags: <defaults>
</compile_context>

<pallas_src>
import functools

import jax
import jax.numpy as jnp
import numpy as np
from jax import lax
from jax.experimental import pallas as pl
from jax.experimental.pallas import tpu as pltpu


def _am_softmax_kernel(lab_ref, x_ref, w_ref, winv_ref, out_ref, *, s, m):
    x = x_ref[...]              # (TB, F)  f32
    w = w_ref[...]              # (F, TC)  f32
    lab = lab_ref[...]          # (TB, 1)  i32
    w_inv = winv_ref[...]       # (1, TC)  f32   hoisted 1 / clamp(||W[:, j]||)

    # Row L2 norm of x, clamped like torch (.clamp(min=1e-12)); fold the scale
    # `s` into the row scaling (B*F multiplies instead of B*C).
    x_norm = jnp.sqrt(jnp.sum(x * x, axis=1, keepdims=True))       # (TB, 1)
    x_scale = s / jnp.maximum(x_norm, 1e-12)                       # (TB, 1)
    xs = x * x_scale                                               # (TB, F)

    # MXU matmul; rhs already has the contraction dim leading.
    cross = lax.dot_general(
        xs, w, (((1,), (0,)), ((), ())),
        preferred_element_type=jnp.float32,
        precision=lax.Precision.HIGHEST,
    )                                                              # (TB, TC)
    costh_s = cross * w_inv                                        # s * cos(theta)

    # Margin "scatter": subtract s*m where the class id equals the row label.
    tb, tc = out_ref.shape
    cls = pl.program_id(1) * tc + lax.broadcasted_iota(jnp.int32, (tb, tc), 1)
    out_ref[...] = jnp.where(lab == cls, costh_s - s * m, costh_s).astype(out_ref.dtype)


def _pick_tile(dim, candidates):
    for t in candidates:
        if dim % t == 0:
            return t
    return dim  # full-extent block is always a legal BlockSpec shape


def am_softmax(x, labels, W, *, s=30.0, m=0.3):
    """Pallas AMSoftmax forward. Returns the (B, C) scaled margin logits."""
    B, F = x.shape
    Fw, C = W.shape
    assert Fw == F, "W must be (in_features, out_features)"
    assert labels.shape[0] == B

    x = x.astype(jnp.float32)
    W = W.astype(jnp.float32)
    labels2d = labels.astype(jnp.int32).reshape(B, 1)

    # Hoisted out of the kernel: per-class 1 / clamp(||W[:, j]||, 1e-12).
    w_inv = 1.0 / jnp.maximum(jnp.sqrt(jnp.sum(W * W, axis=0, keepdims=True)), 1e-12)

    TB = _pick_tile(B, (128, 64, 32, 16, 8))
    TC = _pick_tile(C, (256, 128))
    grid = (B // TB, C // TC)

    # TODO(synk): for very large in_features, also tile the contraction dim
    # (grid K axis + f32 accumulator scratch); full-F tiles are kept here.
    kernel = functools.partial(_am_softmax_kernel, s=float(s), m=float(m))
    return pl.pallas_call(
        kernel,
        out_shape=jax.ShapeDtypeStruct((B, C), jnp.float32),
        grid=grid,
        in_specs=[
            pl.BlockSpec((TB, 1), lambda i, j: (i, 0)),   # labels (per batch tile)
            pl.BlockSpec((TB, F), lambda i, j: (i, 0)),   # x      (batch tiles)
            pl.BlockSpec((F, TC), lambda i, j: (0, j)),   # W      (class tiles)
            pl.BlockSpec((1, TC), lambda i, j: (0, j)),   # W column inverse norms
        ],
        out_specs=pl.BlockSpec((TB, TC), lambda i, j: (i, j)),
        compiler_params=pltpu.CompilerParams(
            dimension_semantics=("parallel", "parallel"),
            vmem_limit_bytes=32 * 1024 * 1024,
        ),
    )(labels2d, x, W, w_inv)


def am_softmax_ref(x, labels, W, *, s=30.0, m=0.3):
    """Pure-JAX mirror of the literal torch forward."""
    x_n = x / jnp.maximum(jnp.sqrt(jnp.sum(x * x, axis=1, keepdims=True)), 1e-12)
    w_n = W / jnp.maximum(jnp.sqrt(jnp.sum(W * W, axis=0, keepdims=True)), 1e-12)
    costh = jnp.matmul(x_n, w_n, precision=lax.Precision.HIGHEST)
    delt = (labels[:, None] == jnp.arange(W.shape[1])[None, :]).astype(costh.dtype) * m
    return s * (costh - delt)


if __name__ == "__main__":
    key = jax.random.PRNGKey(0)
    k_x, k_w, k_l = jax.random.split(key, 3)

    B, F, C = 256, 64, 512          # batch, in_features, out_features (classes)
    s, m = 30.0, 0.3

    x = jax.random.normal(k_x, (B, F), dtype=jnp.float32)
    # ~xavier_normal init scale (exact init value is irrelevant after L2 norm).
    W = jax.random.normal(k_w, (F, C), dtype=jnp.float32) * (2.0 / (F + C)) ** 0.5
    labels = jax.random.randint(k_l, (B,), 0, C, dtype=jnp.int32)

    out = am_softmax(x, labels, W, s=s, m=m)
    jax.block_until_ready(out)

    ref = am_softmax_ref(x, labels, W, s=s, m=m)
    assert out.shape == (B, C)
    assert np.allclose(np.asarray(out), np.asarray(ref), rtol=1e-3, atol=1e-3), (
        float(jnp.max(jnp.abs(out - ref))))
    print("KERNEL_OK")
</pallas_src>

<mosaic_0001>
module attributes {stable_mosaic.version = 11 : i64} {
  func.func @_am_softmax_kernel(%arg0: i32, %arg1: i32, %arg2: memref<128x1xi32, #tpu.memory_space<vmem>>, %arg3: memref<128x64xf32, #tpu.memory_space<vmem>>, %arg4: memref<64x256xf32, #tpu.memory_space<vmem>>, %arg5: memref<1x256xf32, #tpu.memory_space<vmem>>, %arg6: memref<128x256xf32, #tpu.memory_space<vmem>>) attributes {dimension_semantics = [#tpu.dimension_semantics<parallel>, #tpu.dimension_semantics<parallel>], iteration_bounds = array<i64: 2, 2>, scalar_prefetch = 0 : i64, scratch_operands = 0 : i64, tpu.core_type = #tpu.core_type<tc>, window_params = [{transform_indices = @transform_0, window_bounds = array<i64: 128, 1>}, {transform_indices = @transform_1, window_bounds = array<i64: 128, 64>}, {transform_indices = @transform_2, window_bounds = array<i64: 64, 256>}, {transform_indices = @transform_3, window_bounds = array<i64: 1, 256>}, {transform_indices = @transform_4, window_bounds = array<i64: 128, 256>}]} {
    %c0 = arith.constant 0 : index
    %c0_0 = arith.constant 0 : index
    %0 = vector.load %arg3[%c0, %c0_0] : memref<128x64xf32, #tpu.memory_space<vmem>>, vector<128x64xf32>
    %c0_1 = arith.constant 0 : index
    %c0_2 = arith.constant 0 : index
    %1 = vector.load %arg4[%c0_1, %c0_2] : memref<64x256xf32, #tpu.memory_space<vmem>>, vector<64x256xf32>
    %c0_3 = arith.constant 0 : index
    %c0_4 = arith.constant 0 : index
    %2 = vector.load %arg2[%c0_3, %c0_4] : memref<128x1xi32, #tpu.memory_space<vmem>>, vector<128x1xi32>
    %c0_5 = arith.constant 0 : index
    %c0_6 = arith.constant 0 : index
    %3 = vector.load %arg5[%c0_5, %c0_6] : memref<1x256xf32, #tpu.memory_space<vmem>>, vector<1x256xf32>
    %4 = arith.mulf %0, %0 : vector<128x64xf32>
    %cst = arith.constant dense<0.000000e+00> : vector<128xf32>
    %5 = vector.multi_reduction <add>, %4, %cst [1] : vector<128x64xf32> to vector<128xf32>
    %6 = vector.shape_cast %5 : vector<128xf32> to vector<128x1xf32>
    %7 = math.sqrt %6 : vector<128x1xf32>
    %cst_7 = arith.constant 9.99999996E-13 : f32
    %8 = vector.broadcast %cst_7 : f32 to vector<128x1xf32>
    %9 = arith.maximumf %7, %8 : vector<128x1xf32>
    %cst_8 = arith.constant 3.000000e+01 : f32
    %10 = vector.broadcast %cst_8 : f32 to vector<128x1xf32>
    %11 = arith.divf %10, %9 : vector<128x1xf32>
    %12 = vector.broadcast %11 : vector<128x1xf32> to vector<128x64xf32>
    %13 = arith.mulf %0, %12 : vector<128x64xf32>
    %cst_9 = arith.constant dense<0.000000e+00> : vector<128x256xf32>
    %14 = tpu.matmul %13, %1, %cst_9 {dimension_numbers = #tpu.dot_dimension_numbers<[1], [0], [0], [1], [0, 0, 1, 1], [], []>, precision = #tpu.contract_precision<fp32>} : vector<128x64xf32>, vector<64x256xf32>, vector<128x256xf32> -> vector<128x256xf32>
    %15 = vector.broadcast %3 : vector<1x256xf32> to vector<128x256xf32>
    %16 = arith.mulf %14, %15 : vector<128x256xf32>
    %c256_i32 = arith.constant 256 : i32
    %17 = arith.muli %arg1, %c256_i32 : i32
    %18 = tpu.iota {dimensions = array<i32: 1>} : vector<128x256xi32>
    %19 = vector.broadcast %17 : i32 to vector<128x256xi32>
    %20 = arith.addi %19, %18 : vector<128x256xi32>
    %21 = vector.broadcast %2 : vector<128x1xi32> to vector<128x256xi32>
    %22 = arith.cmpi eq, %21, %20 : vector<128x256xi32>
    %cst_10 = arith.constant 9.000000e+00 : f32
    %23 = vector.broadcast %cst_10 : f32 to vector<128x256xf32>
    %24 = arith.subf %16, %23 : vector<128x256xf32>
    %25 = arith.select %22, %24, %16 : vector<128x256xi1>, vector<128x256xf32>
    %c0_11 = arith.constant 0 : index
    %c0_12 = arith.constant 0 : index
    %26 = vector.load %arg6[%c0_11, %c0_12] : memref<128x256xf32, #tpu.memory_space<vmem>>, vector<128x256xf32>
    tpu.vector_store %arg6[%c0_11, %c0_12], %25 {strides = array<i32>} : memref<128x256xf32, #tpu.memory_space<vmem>>, vector<128x256xf32>,
    return
  }
  func.func @transform_0(%arg0: i32, %arg1: i32) -> (i32, i32) {
    %c0_i32 = arith.constant 0 : i32
    %c0_i32_0 = arith.constant 0 : i32
    return %arg0, %c0_i32 : i32, i32
  }
  func.func @transform_1(%arg0: i32, %arg1: i32) -> (i32, i32) {
    %c0_i32 = arith.constant 0 : i32
    %c0_i32_0 = arith.constant 0 : i32
    return %arg0, %c0_i32 : i32, i32
  }
  func.func @transform_2(%arg0: i32, %arg1: i32) -> (i32, i32) {
    %c0_i32 = arith.constant 0 : i32
    %c0_i32_0 = arith.constant 0 : i32
    return %c0_i32, %arg1 : i32, i32
  }
  func.func @transform_3(%arg0: i32, %arg1: i32) -> (i32, i32) {
    %c0_i32 = arith.constant 0 : i32
    %c0_i32_0 = arith.constant 0 : i32
    return %c0_i32, %arg1 : i32, i32
  }
  func.func @transform_4(%arg0: i32, %arg1: i32) -> (i32, i32) {
    %c0_i32 = arith.constant 0 : i32
    return %arg0, %arg1 : i32, i32
  }
}

</mosaic_0001>

<llo_original>
// kernel: tpu_custom_call.1
$region0: #{tpu_custom_call.1}
  #allocation0 [shape = 'u32[]', space=smem, size = 0x4, offset = 0x4, fixed_abs, tag = 'smem constant byte address 0x4 - core index']
  #allocation1 [shape = 'u32[144,128]{1,0:T(1,128)}', space=vmem, size = 0x12000, scoped, tag = 'internal scratch']
  %s0 = inlined_call_operand.vmem [shape: s32[256,1], index: 0, kind: input, shape index: {}]
  %s1 = inlined_call_operand.vmem [shape: f32[256,64], index: 1, kind: input, shape index: {}]
  %s2 = inlined_call_operand.vmem [shape: f32[64,512], index: 2, kind: input, shape index: {}]
  %s3 = inlined_call_operand.vmem [shape: f32[1,512], index: 3, kind: input, shape index: {}]
  %s4 = inlined_call_operand.hbm [shape: f32[256,512], index: 4, kind: output, shape index: {}]
  %s5 = sld [smem:[#allocation0]]
  $region72: #{tpu_custom_call.1} parent=0
    _
  %s7 = ssub.s32 1, %s5
  %s8 = scalar_select 0, %s7, %s5
  $region1: #{tpu_custom_call.1} parent=0
    #allocation2 [shape = 'u8[131072]{0}', space=vmem, size = 0x20000, scoped, tag = 'input window, operand 2']
    #allocation3 [shape = 'u8[262144]{0}', space=vmem, size = 0x40000, scoped, tag = 'output window, operand 0']
    #allocation4 [shape = 's32[2]{0}', space=sflag, size = 0x8, scoped, tag = 'scoped memory for tpu_custom_call.1']
    %9 = vsyncpa [#allocation4], 0
    %s10 = scalar_lea.sflag [#allocation4], 1
    %11 = vsyncpa %s10, 0
    loop: start=0, step=1, limit=6
    $region2: #{tpu_custom_call.1} parent=1 // loop_pre_header
      _
    $region3: #{tpu_custom_call.1} parent=1 // loop_header
      %s13 = sphi 0, %s17
      %p14 = scmp.ge.s32.totalorder %s13, 6
      %s20 = sphi 0, %s32
      %s21 = sphi 0, %s28
      %s22 = sphi 0, %s20
      %s23 = sphi 0, %s21
      %s24 = sphi 0, %s22
      %s25 = sphi 0, %s23
      %s35 = sphi 0, %s37
      %s38 = sphi 0, %s35
      %s39 = sphi 0, %s38
      %s55 = sphi 0, %s39
      %s61 = sphi 0, %s63
      %s64 = sphi 0, %s61
      %s65 = sphi 0, %s64
      %s81 = sphi 0, %s65
      %s87 = sphi 0, %s89
      %s90 = sphi 0, %s87
      %s91 = sphi 0, %s90
      %s107 = sphi 0, %s91
      %s113 = sphi 0, %s115
      %s116 = sphi 0, %s113
      %s117 = sphi 0, %s116
      %s133 = sphi 0, %s117
      %s141 = sphi 0, %s143
      %s144 = sphi 0, %s141
      %s145 = sphi 0, %s144
      %s161 = sphi 0, %s145
    $region4: #{tpu_custom_call.1} parent=1 // loop_header_branch
      %16 = sbr.rel (%p14) target = $region8
    $region5: #{tpu_custom_call.1} parent=1 // loop_body
      %s18 = ssub.s32 %s13, 1
      %s19 = ssub.s32 %s13, 2
      %s26 = sadd.s32 1, %s21
      %p27 = scmp.ge.s32.totalorder %s26, 2
      %s28 = scalar_select %p27, 0, %s26
      %s29 = sadd.s32 1, %s20
      %s30 = scalar_select %p27, %s29, %s20
      %p31 = scmp.ge.s32.totalorder %s30, 2
      %s32 = scalar_select %p31, 0, %s30
      %s33 = ssub.s32 %s20, %s32
      %p34 = scmp.eq.s32.totalorder %s33, 0
      %s36 = sadd.s32 %s35, 1
      %s37 = scalar_select %p34, %s35, %s36
      %p40 = pneg %p34
      %p41 = scmp.eq.s32.totalorder %s13, 3
      %p42 = por %p40, %p41
      %p43 = scmp.ne.s32.totalorder %s35, %s38
      %p44 = scmp.eq.s32.totalorder %s13, 0
      %p45 = por %p43, %p44
      %p46 = scmp.ne.s32.totalorder %s35, %s38
      %p47 = scmp.eq.s32.totalorder %s18, 3
      %p48 = por %p46, %p47
      %p49 = scmp.ne.s32.totalorder %s38, %s39
      %p50 = scmp.eq.s32.totalorder %s18, 0
      %p51 = por %p49, %p50
      %p52 = scmp.ne.s32.totalorder %s38, %s39
      %p53 = scmp.eq.s32.totalorder %s19, 3
      %p54 = por %p52, %p53
      %p56 = scmp.ne.s32.totalorder %s39, %s55
      %p57 = scmp.eq.s32.totalorder %s19, 0
      %p58 = por %p56, %p57
      %s59 = ssub.s32 %s20, %s32
      %p60 = scmp.eq.s32.totalorder %s59, 0
      %s62 = sadd.s32 %s61, 1
      %s63 = scalar_select %p60, %s61, %s62
      %p66 = pneg %p60
      %p67 = scmp.eq.s32.totalorder %s13, 3
      %p68 = por %p66, %p67
      %p69 = scmp.ne.s32.totalorder %s61, %s64
      %p70 = scmp.eq.s32.totalorder %s13, 0
      %p71 = por %p69, %p70
      %p72 = scmp.ne.s32.totalorder %s61, %s64
      %p73 = scmp.eq.s32.totalorder %s18, 3
      %p74 = por %p72, %p73
      %p75 = scmp.ne.s32.totalorder %s64, %s65
      %p76 = scmp.eq.s32.totalorder %s18, 0
      %p77 = por %p75, %p76
      %p78 = scmp.ne.s32.totalorder %s64, %s65
      %p79 = scmp.eq.s32.totalorder %s19, 3
      %p80 = por %p78, %p79
      %p82 = scmp.ne.s32.totalorder %s65, %s81
      %p83 = scmp.eq.s32.totalorder %s19, 0
      %p84 = por %p82, %p83
      %s85 = ssub.s32 %s21, %s28
      %p86 = scmp.eq.s32.totalorder %s85, 0
      %s88 = sadd.s32 %s87, 1
      %s89 = scalar_select %p86, %s87, %s88
      %p92 = pneg %p86
      %p93 = scmp.eq.s32.totalorder %s13, 3
      %p94 = por %p92, %p93
      %p95 = scmp.ne.s32.totalorder %s87, %s90
      %p96 = scmp.eq.s32.totalorder %s13, 0
      %p97 = por %p95, %p96
      %p98 = scmp.ne.s32.totalorder %s87, %s90
      %p99 = scmp.eq.s32.totalorder %s18, 3
      %p100 = por %p98, %p99
      %p101 = scmp.ne.s32.totalorder %s90, %s91
      %p102 = scmp.eq.s32.totalorder %s18, 0
      %p103 = por %p101, %p102
      %p104 = scmp.ne.s32.totalorder %s90, %s91
      %p105 = scmp.eq.s32.totalorder %s19, 3
      %p106 = por %p104, %p105
      %p108 = scmp.ne.s32.totalorder %s91, %s107
      %p109 = scmp.eq.s32.totalorder %s19, 0
      %p110 = por %p108, %p109
      %s111 = ssub.s32 %s21, %s28
      %p112 = scmp.eq.s32.totalorder %s111, 0
      %s114 = sadd.s32 %s113, 1
      %s115 = scalar_select %p112, %s113, %s114
      %p118 = pneg %p112
      %p119 = scmp.eq.s32.totalorder %s13, 3
      %p120 = por %p118, %p119
      %p121 = scmp.ne.s32.totalorder %s113, %s116
      %p122 = scmp.eq.s32.totalorder %s13, 0
      %p123 = por %p121, %p122
      %p124 = scmp.ne.s32.totalorder %s113, %s116
      %p125 = scmp.eq.s32.totalorder %s18, 3
      %p126 = por %p124, %p125
      %p127 = scmp.ne.s32.totalorder %s116, %s117
      %p128 = scmp.eq.s32.totalorder %s18, 0
      %p129 = por %p127, %p128
      %p130 = scmp.ne.s32.totalorder %s116, %s117
      %p131 = scmp.eq.s32.totalorder %s19, 3
      %p132 = por %p130, %p131
      %p134 = scmp.ne.s32.totalorder %s117, %s133
      %p135 = scmp.eq.s32.totalorder %s19, 0
      %p136 = por %p134, %p135
      %s137 = ssub.s32 %s20, %s32
      %s138 = ssub.s32 %s21, %s28
      %s139 = sor.u32 %s137, %s138
      %p140 = scmp.eq.s32.totalorder %s139, 0
      %s142 = sadd.s32 %s141, 1
      %s143 = scalar_select %p140, %s141, %s142
      %p146 = pneg %p140
      %p147 = scmp.eq.s32.totalorder %s13, 3
      %p148 = por %p146, %p147
      %p149 = scmp.ne.s32.totalorder %s141, %s144
      %p150 = scmp.eq.s32.totalorder %s13, 0
      %p151 = por %p149, %p150
      %p152 = scmp.ne.s32.totalorder %s141, %s144
      %p153 = scmp.eq.s32.totalorder %s18, 3
      %p154 = por %p152, %p153
      %p155 = scmp.ne.s32.totalorder %s144, %s145
      %p156 = scmp.eq.s32.totalorder %s18, 0
      %p157 = por %p155, %p156
      %p158 = scmp.ne.s32.totalorder %s144, %s145
      %p159 = scmp.eq.s32.totalorder %s19, 3
      %p160 = por %p158, %p159
      %p162 = scmp.ne.s32.totalorder %s145, %s161
      %p163 = scmp.eq.s32.totalorder %s19, 0
      %p164 = por %p162, %p163
      %p165 = scmp.le.s32.totalorder 1, %s13
      %p166 = scmp.lt.s32.totalorder %s13, 5
      %p167 = pnand %p165, %p166
      %p168 = pneg %p167
      // Predicated region
      $region9: #{tpu_custom_call.1} parent=5 // pred_check
        _
      $region10: #{tpu_custom_call.1} parent=5 // pred_check_branch
        %170 = sbr.rel (%p167) target = $region12
      $region11: #{tpu_custom_call.1} parent=5 // pred_region
        %s171 = ssub.s32 %s13, 1
      $region12: #{tpu_custom_call.1} parent=5 // pred_fallthru
        _
      %p172 = scmp.lt.s32.totalorder %s13, 4
      // Predicated region
      $region13: #{tpu_custom_call.1} parent=5 // pred_check
        %p173 = pneg %p172
      $region14: #{tpu_custom_call.1} parent=5 // pred_check_branch
        %175 = sbr.rel (%p173) target = $region16
      $region15: #{tpu_custom_call.1} parent=5 // pred_region
        // Predicated region
        $region17: #{tpu_custom_call.1} parent=15 // pred_check
          %p176 = pneg %p45
        $region18: #{tpu_custom_call.1} parent=15 // pred_check_branch
          %178 = sbr.rel (%p176) target = $region20
        $region19: #{tpu_custom_call.1} parent=15 // pred_region
          %s179 = smul.u32 16, %s20
          %p180 = scmp.lt.s32.totalorder %s179, 31
          %s181 = scalar_select %p180, %s179, 31
          %s182 = smul.addr %s181, 8
          %s183 = scalar_lea.vmem %s0, %s182
          %s184 = smul.u32 16, %s20
        $region20: #{tpu_custom_call.1} parent=15 // pred_fallthru
          _
        // Predicated region
        $region21: #{tpu_custom_call.1} parent=15 // pred_check
          %p185 = pneg %p71
        $region22: #{tpu_custom_call.1} parent=15 // pred_check_branch
          %187 = sbr.rel (%p185) target = $region24
        $region23: #{tpu_custom_call.1} parent=15 // pred_region
          %s188 = smul.u32 16, %s20
          %p189 = scmp.lt.s32.totalorder %s188, 31
          %s190 = scalar_select %p189, %s188, 31
          %s191 = smul.addr %s190, 8
          %s192 = scalar_lea.vmem %s1, %s191
          %s193 = smul.u32 16, %s20
        $region24: #{tpu_custom_call.1} parent=15 // pred_fallthru
          _
        // Predicated region
        $region25: #{tpu_custom_call.1} parent=15 // pred_check
          %p194 = pneg %p97
        $region26: #{tpu_custom_call.1} parent=15 // pred_check_branch
          %196 = sbr.rel (%p194) target = $region28
        $region27: #{tpu_custom_call.1} parent=15 // pred_region
          %s197 = sand.u32 %s87, 1
          %s198 = sand.u32 %s87, 1
          %s199 = smul.addr %s198, 128
          %s200 = scalar_lea.vmem [#allocation2], %s199
          %s201 = smul.u32 2, %s21
          %s202 = smul.addr %s201, 8
          %s203 = scalar_lea.vmem %s2, %s202
          // Predicated region
          $region29: #{tpu_custom_call.1} parent=27 // pred_check
            _
          $region30: #{tpu_custom_call.1} parent=27 // pred_check_branch
            %205 = sbr.rel (0) target = $region32
          $region31: #{tpu_custom_call.1} parent=27 // pred_region
            // Predicated region
            $region33: #{tpu_custom_call.1} parent=31 // pred_check
              _
            $region34: #{tpu_custom_call.1} parent=31 // pred_check_branch
              %207 = sbr.rel (0) target = $region36
            $region35: #{tpu_custom_call.1} parent=31 // pred_region
              loop: start=0, step=1, limit=1
              $region37: #{tpu_custom_call.1} parent=35 // loop_pre_header
                _
              $region38: #{tpu_custom_call.1} parent=35 // loop_header
                %s209 = sphi 0, %s213
                %p210 = scmp.ge.s32.totalorder %s209, 1
                %s214 = sphi %s203, %s203
                %s215 = sphi %s200, %s200
              $region39: #{tpu_custom_call.1} parent=35 // loop_header_branch
                %212 = sbr.rel (%p210) target = $region43
              $region40: #{tpu_custom_call.1} parent=35 // loop_body
                %v216 = vld [vmem:[%s214] sm:$0xff]
                %217 = vst [vmem:[%s215] sm:$0xff] %v216
                %v218 = vld [vmem:[%s214 + $0x8] sm:$0xff]
                %219 = vst [vmem:[%s215 + $0x8] sm:$0xff] %v218
                %v220 = vld [vmem:[%s214 + $0x20] sm:$0xff]
                %221 = vst [vmem:[%s215 + $0x10] sm:$0xff] %v220
                %v222 = vld [vmem:[%s214 + $0x28] sm:$0xff]
                %223 = vst [vmem:[%s215 + $0x18] sm:$0xff] %v222
                %v224 = vld [vmem:[%s214 + $0x40] sm:$0xff]
                %225 = vst [vmem:[%s215 + $0x20] sm:$0xff] %v224
                %v226 = vld [vmem:[%s214 + $0x48] sm:$0xff]
                %227 = vst [vmem:[%s215 + $0x28] sm:$0xff] %v226
                %v228 = vld [vmem:[%s214 + $0x60] sm:$0xff]
                %229 = vst [vmem:[%s215 + $0x30] sm:$0xff] %v228
                %v230 = vld [vmem:[%s214 + $0x68] sm:$0xff]
                %231 = vst [vmem:[%s215 + $0x38] sm:$0xff] %v230
                %v232 = vld [vmem:[%s214 + $0x80] sm:$0xff]
                %233 = vst [vmem:[%s215 + $0x40] sm:$0xff] %v232
                %v234 = vld [vmem:[%s214 + $0x88] sm:$0xff]
                %235 = vst [vmem:[%s215 + $0x48] sm:$0xff] %v234
                %v236 = vld [vmem:[%s214 + $0xa0] sm:$0xff]
                %237 = vst [vmem:[%s215 + $0x50] sm:$0xff] %v236
                %v238 = vld [vmem:[%s214 + $0xa8] sm:$0xff]
                %239 = vst [vmem:[%s215 + $0x58] sm:$0xff] %v238
                %v240 = vld [vmem:[%s214 + $0xc0] sm:$0xff]
                %241 = vst [vmem:[%s215 + $0x60] sm:$0xff] %v240
                %v242 = vld [vmem:[%s214 + $0xc8] sm:$0xff]
                %243 = vst [vmem:[%s215 + $0x68] sm:$0xff] %v242
                %v244 = vld [vmem:[%s214 + $0xe0] sm:$0xff]
                %245 = vst [vmem:[%s215 + $0x70] sm:$0xff] %v244
                %v246 = vld [vmem:[%s214 + $0xe8] sm:$0xff]
                %247 = vst [vmem:[%s215 + $0x78] sm:$0xff] %v246
              $region41: #{tpu_custom_call.1} parent=35 // loop_footer
                %s213 = sadd.s32 1, %s209
              $region42: #{tpu_custom_call.1} parent=35 // loop_footer_branch
                %208 = sbr.rel target = $region38
              $region43: #{tpu_custom_call.1} parent=35 // loop_exit
                _
            $region36: #{tpu_custom_call.1} parent=31 // pred_fallthru
              _
            // Predicated region
            $region44: #{tpu_custom_call.1} parent=31 // pred_check
              _
            $region45: #{tpu_custom_call.1} parent=31 // pred_check_branch
              %249 = sbr.rel target = $region47
            $region46: #{tpu_custom_call.1} parent=31 // pred_region
              _
            $region47: #{tpu_custom_call.1} parent=31 // pred_fallthru
              _
          $region32: #{tpu_custom_call.1} parent=27 // pred_fallthru
            _
          %250 = vnop
        $region28: #{tpu_custom_call.1} parent=15 // pred_fallthru
          _
        // Predicated region
        $region48: #{tpu_custom_call.1} parent=15 // pred_check
          %p251 = pneg %p123
        $region49: #{tpu_custom_call.1} parent=15 // pred_check_branch
          %253 = sbr.rel (%p251) target = $region51
        $region50: #{tpu_custom_call.1} parent=15 // pred_region
          %s254 = smul.u32 2, %s21
          %p255 = scmp.lt.s32.totalorder %s254, 3
          %s256 = scalar_select %p255, %s254, 3
          %s257 = scalar_lea.vmem %s3, %s256
          %s258 = smul.u32 2, %s21
        $region51: #{tpu_custom_call.1} parent=15 // pred_fallthru
          _
      $region16: #{tpu_custom_call.1} parent=5 // pred_fallthru
        _
      %p259 = scmp.le.s32.totalorder 1, %s13
      %p260 = scmp.lt.s32.totalorder %s13, 5
      %p261 = pnand %p259, %p260
      %p262 = pneg %p261
      // Predicated region
      $region52: #{tpu_custom_call.1} parent=5 // pred_check
        _
      $region53: #{tpu_custom_call.1} parent=5 // pred_check_branch
        %264 = sbr.rel (%p261) target = $region55
      $region54: #{tpu_custom_call.1} parent=5 // pred_region
        %s265 = ssub.s32 %s13, 1
        %s266 = sand.u32 %s90, 1
        %s267 = sand.u32 %s90, 1
        %s268 = smul.addr %s267, 128
        %s269 = scalar_lea.vmem [#allocation2], %s268
        // Predicated region
        $region56: #{tpu_custom_call.1} parent=54 // pred_check
          %p270 = pneg %p103
        $region57: #{tpu_custom_call.1} parent=54 // pred_check_branch
          %272 = sbr.rel (%p270) target = $region59
        $region58: #{tpu_custom_call.1} parent=54 // pred_region
          _
        $region59: #{tpu_custom_call.1} parent=54 // pred_fallthru
          _
        %s273 = smul.u32 16, %s22
        %p274 = scmp.lt.s32.totalorder %s273, 31
        %s275 = scalar_select %p274, %s273, 31
        %s276 = smul.addr %s275, 8
        %s277 = scalar_lea.vmem %s0, %s276
        %p278 = pneg %p51
        %p279 = pneg %p48
        %s280 = smul.u32 16, %s22
        %p281 = scmp.lt.s32.totalorder %s280, 31
        %s282 = scalar_select %p281, %s280, 31
        %s283 = smul.addr %s282, 8
        %s284 = scalar_lea.vmem %s1, %s283
        %p285 = pneg %p77
        %p286 = pneg %p74
        %s287 = sand.u32 %s90, 1
        %s288 = sand.u32 %s90, 1
        %s289 = smul.addr %s288, 128
        %s290 = scalar_lea.vmem [#allocation2], %s289
        %p291 = pneg %p103
        %p292 = pneg %p100
        %s293 = smul.u32 2, %s23
        %p294 = scmp.lt.s32.totalorder %s293, 3
        %s295 = scalar_select %p294, %s293, 3
        %s296 = scalar_lea.vmem %s3, %s295
        %p297 = pneg %p129
        %p298 = pneg %p126
        %p299 = pneg %p157
        %p300 = pneg %p154
        %s301 = sand.u32 %s144, 1
        %s302 = scalar_lea.sflag [#allocation4], %s301
        %s303 = sand.u32 %s144, 1
        %s304 = smul.addr %s303, 256
        %s305 = scalar_lea.vmem [#allocation3], %s304
        %s306 = smul.u32 16, %s22
        %p307 = scmp.lt.s32.totalorder %s306, 31
        %s308 = scalar_select %p307, %s306, 31
        %s309 = smul.addr %s308, 8
        %s310 = scalar_lea.vmem %s0, %s309
        %s311 = smul.u32 16, %s22
        %s312 = smul.u32 16, %s22
        %p313 = scmp.lt.s32.totalorder %s312, 31
        %s314 = scalar_select %p313, %s312, 31
        %s315 = smul.addr %s314, 8
        %s316 = scalar_lea.vmem %s1, %s315
        %s317 = smul.u32 16, %s22
        %s318 = smul.u32 2, %s23
        %s319 = smul.u32 2, %s23
        %p320 = scmp.lt.s32.totalorder %s319, 3
        %s321 = scalar_select %p320, %s319, 3
        %s322 = scalar_lea.vmem %s3, %s321
        %s323 = smul.u32 2, %s23
        %s324 = smul.u32 16, %s22
        %s325 = smul.u32 2, %s23
        %v326 = vld [vmem:[%s316] sm:$0xff]
        %v327 = vld [vmem:[%s316 + $0x8] sm:$0xff]
        %v328 = vld [vmem:[%s316 + $0x10] sm:$0xff]
        %v329 = vld [vmem:[%s316 + $0x18] sm:$0xff]
        %v330 = vld [vmem:[%s316 + $0x20] sm:$0xff]
        %v331 = vld [vmem:[%s316 + $0x28] sm:$0xff]
        %v332 = vld [vmem:[%s316 + $0x30] sm:$0xff]
        %v333 = vld [vmem:[%s316 + $0x38] sm:$0xff]
        %v334 = vld [vmem:[%s316 + $0x40] sm:$0xff]
        %v335 = vld [vmem:[%s316 + $0x48] sm:$0xff]
        %v336 = vld [vmem:[%s316 + $0x50] sm:$0xff]
        %v337 = vld [vmem:[%s316 + $0x58] sm:$0xff]
        %v338 = vld [vmem:[%s316 + $0x60] sm:$0xff]
        %v339 = vld [vmem:[%s316 + $0x68] sm:$0xff]
        %v340 = vld [vmem:[%s316 + $0x70] sm:$0xff]
        %v341 = vld [vmem:[%s316 + $0x78] sm:$0xff]
        %v342 = vld [vmem:[%s269] sm:$0xff]
        %v343 = vld [vmem:[%s269 + $0x8] sm:$0xff]
        %v344 = vld [vmem:[%s269 + $0x10] sm:$0xff]
        %v345 = vld [vmem:[%s269 + $0x18] sm:$0xff]
        %v346 = vld [vmem:[%s269 + $0x20] sm:$0xff]
        %v347 = vld [vmem:[%s269 + $0x28] sm:$0xff]
        %v348 = vld [vmem:[%s269 + $0x30] sm:$0xff]
        %v349 = vld [vmem:[%s269 + $0x38] sm:$0xff]
        %v350 = vld [vmem:[%s269 + $0x40] sm:$0xff]
        %v351 = vld [vmem:[%s269 + $0x48] sm:$0xff]
        %v352 = vld [vmem:[%s269 + $0x50] sm:$0xff]
        %v353 = vld [vmem:[%s269 + $0x58] sm:$0xff]
        %v354 = vld [vmem:[%s269 + $0x60] sm:$0xff]
        %v355 = vld [vmem:[%s269 + $0x68] sm:$0xff]
        %v356 = vld [vmem:[%s269 + $0x70] sm:$0xff]
        %v357 = vld [vmem:[%s269 + $0x78] sm:$0xff]
        %v358 = vld [vmem:[%s310] sm:$0xff]
        %v359 = vld [vmem:[%s310 + $0x8] sm:$0xff]
        %v360 = vld [vmem:[%s310 + $0x10] sm:$0xff]
        %v361 = vld [vmem:[%s310 + $0x18] sm:$0xff]
        %v362 = vld [vmem:[%s310 + $0x20] sm:$0xff]
        %v363 = vld [vmem:[%s310 + $0x28] sm:$0xff]
        %v364 = vld [vmem:[%s310 + $0x30] sm:$0xff]
        %v365 = vld [vmem:[%s310 + $0x38] sm:$0xff]
        %v366 = vld [vmem:[%s310 + $0x40] sm:$0xff]
        %v367 = vld [vmem:[%s310 + $0x48] sm:$0xff]
        %v368 = vld [vmem:[%s310 + $0x50] sm:$0xff]
        %v369 = vld [vmem:[%s310 + $0x58] sm:$0xff]
        %v370 = vld [vmem:[%s310 + $0x60] sm:$0xff]
        %v371 = vld [vmem:[%s310 + $0x68] sm:$0xff]
        %v372 = vld [vmem:[%s310 + $0x70] sm:$0xff]
        %v373 = vld [vmem:[%s310 + $0x78] sm:$0xff]
        %v374 = vld [vmem:[%s322] sm:$0x3]
        %v375 = vmul.f32 %v326, %v326
        %v376 = vmul.f32 %v327, %v327
        %v377 = vmul.f32 %v328, %v328
        %v378 = vmul.f32 %v329, %v329
        %v379 = vmul.f32 %v330, %v330
        %v380 = vmul.f32 %v331, %v331
        %v381 = vmul.f32 %v332, %v332
        %v382 = vmul.f32 %v333, %v333
        %v383 = vmul.f32 %v334, %v334
        %v384 = vmul.f32 %v335, %v335
        %v385 = vmul.f32 %v336, %v336
        %v386 = vmul.f32 %v337, %v337
        %v387 = vmul.f32 %v338, %v338
        %v388 = vmul.f32 %v339, %v339
        %v389 = vmul.f32 %v340, %v340
        %v390 = vmul.f32 %v341, %v341
        %vm391 = vcmask 523264
        %v392 = vsel %vm391, %v375, 0.0
        %393 = vadd.xlane.f32.xlu0 %v392
        %v394 = vpop.xlane.xlu0 %393
        %v395 = vsel %vm391, %v376, 0.0
        %396 = vadd.xlane.f32.xlu0 %v395
        %v397 = vpop.xlane.xlu0 %396
        %v398 = vsel %vm391, %v377, 0.0
        %399 = vadd.xlane.f32.xlu0 %v398
        %v400 = vpop.xlane.xlu0 %399
        %v401 = vsel %vm391, %v378, 0.0
        %402 = vadd.xlane.f32.xlu0 %v401
        %v403 = vpop.xlane.xlu0 %402
        %v404 = vsel %vm391, %v379, 0.0
        %405 = vadd.xlane.f32.xlu0 %v404
        %v406 = vpop.xlane.xlu0 %405
        %v407 = vsel %vm391, %v380, 0.0
        %408 = vadd.xlane.f32.xlu0 %v407
        %v409 = vpop.xlane.xlu0 %408
        %v410 = vsel %vm391, %v381, 0.0
        %411 = vadd.xlane.f32.xlu0 %v410
        %v412 = vpop.xlane.xlu0 %411
        %v413 = vsel %vm391, %v382, 0.0
        %414 = vadd.xlane.f32.xlu0 %v413
        %v415 = vpop.xlane.xlu0 %414
        %v416 = vsel %vm391, %v383, 0.0
        %417 = vadd.xlane.f32.xlu0 %v416
        %v418 = vpop.xlane.xlu0 %417
        %v419 = vsel %vm391, %v384, 0.0
        %420 = vadd.xlane.f32.xlu0 %v419
        %v421 = vpop.xlane.xlu0 %420
        %v422 = vsel %vm391, %v385, 0.0
        %423 = vadd.xlane.f32.xlu0 %v422
        %v424 = vpop.xlane.xlu0 %423
        %v425 = vsel %vm391, %v386, 0.0
        %426 = vadd.xlane.f32.xlu0 %v425
        %v427 = vpop.xlane.xlu0 %426
        %v428 = vsel %vm391, %v387, 0.0
        %429 = vadd.xlane.f32.xlu0 %v428
        %v430 = vpop.xlane.xlu0 %429
        %v431 = vsel %vm391, %v388, 0.0
        %432 = vadd.xlane.f32.xlu0 %v431
        %v433 = vpop.xlane.xlu0 %432
        %v434 = vsel %vm391, %v389, 0.0
        %435 = vadd.xlane.f32.xlu0 %v434
        %v436 = vpop.xlane.xlu0 %435
        %v437 = vsel %vm391, %v390, 0.0
        %438 = vadd.xlane.f32.xlu0 %v437
        %v439 = vpop.xlane.xlu0 %438
        %v440 = vrsqrt.pop %v394
        %v441 = vmul.f32 %v394, %v440
        %vm442 = vcmp.eq.f32.partialorder %v394, inf
        %v443 = vsel %vm442, %v394, %v441
        %vm444 = vcmp.eq.f32.partialorder %v394, 0.0
        %v445 = vand.u32 %v394, 2147483648
        %v446 = vsel %vm444, %v445, %v443
        %v447 = vrsqrt.pop %v397
        %v448 = vmul.f32 %v397, %v447
        %vm449 = vcmp.eq.f32.partialorder %v397, inf
        %v450 = vsel %vm449, %v397, %v448
        %vm451 = vcmp.eq.f32.partialorder %v397, 0.0
        %v452 = vand.u32 %v397, 2147483648
        %v453 = vsel %vm451, %v452, %v450
        %v454 = vrsqrt.pop %v400
        %v455 = vmul.f32 %v400, %v454
        %vm456 = vcmp.eq.f32.partialorder %v400, inf
        %v457 = vsel %vm456, %v400, %v455
        %vm458 = vcmp.eq.f32.partialorder %v400, 0.0
        %v459 = vand.u32 %v400, 2147483648
        %v460 = vsel %vm458, %v459, %v457
        %v461 = vrsqrt.pop %v403
        %v462 = vmul.f32 %v403, %v461
        %vm463 = vcmp.eq.f32.partialorder %v403, inf
        %v464 = vsel %vm463, %v403, %v462
        %vm465 = vcmp.eq.f32.partialorder %v403, 0.0
        %v466 = vand.u32 %v403, 2147483648
        %v467 = vsel %vm465, %v466, %v464
        %v468 = vrsqrt.pop %v406
        %v469 = vmul.f32 %v406, %v468
        %vm470 = vcmp.eq.f32.partialorder %v406, inf
        %v471 = vsel %vm470, %v406, %v469
        %vm472 = vcmp.eq.f32.partialorder %v406, 0.0
        %v473 = vand.u32 %v406, 2147483648
        %v474 = vsel %vm472, %v473, %v471
        %v475 = vrsqrt.pop %v409
        %v476 = vmul.f32 %v409, %v475
        %vm477 = vcmp.eq.f32.partialorder %v409, inf
        %v478 = vsel %vm477, %v409, %v476
        %vm479 = vcmp.eq.f32.partialorder %v409, 0.0
        %v480 = vand.u32 %v409, 2147483648
        %v481 = vsel %vm479, %v480, %v478
        %v482 = vrsqrt.pop %v412
        %v483 = vmul.f32 %v412, %v482
        %vm484 = vcmp.eq.f32.partialorder %v412, inf
        %v485 = vsel %vm484, %v412, %v483
        %vm486 = vcmp.eq.f32.partialorder %v412, 0.0
        %v487 = vand.u32 %v412, 2147483648
        %v488 = vsel %vm486, %v487, %v485
        %v489 = vrsqrt.pop %v415
        %v490 = vmul.f32 %v415, %v489
        %vm491 = vcmp.eq.f32.partialorder %v415, inf
        %v492 = vsel %vm491, %v415, %v490
        %vm493 = vcmp.eq.f32.partialorder %v415, 0.0
        %v494 = vand.u32 %v415, 2147483648
        %v495 = vsel %vm493, %v494, %v492
        %v496 = vrsqrt.pop %v418
        %v497 = vmul.f32 %v418, %v496
        %vm498 = vcmp.eq.f32.partialorder %v418, inf
        %v499 = vsel %vm498, %v418, %v497
        %vm500 = vcmp.eq.f32.partialorder %v418, 0.0
        %v501 = vand.u32 %v418, 2147483648
        %v502 = vsel %vm500, %v501, %v499
        %v503 = vrsqrt.pop %v421
        %v504 = vmul.f32 %v421, %v503
        %vm505 = vcmp.eq.f32.partialorder %v421, inf
        %v506 = vsel %vm505, %v421, %v504
        %vm507 = vcmp.eq.f32.partialorder %v421, 0.0
        %v508 = vand.u32 %v421, 2147483648
        %v509 = vsel %vm507, %v508, %v506
        %v510 = vrsqrt.pop %v424
        %v511 = vmul.f32 %v424, %v510
        %vm512 = vcmp.eq.f32.partialorder %v424, inf
        %v513 = vsel %vm512, %v424, %v511
        %vm514 = vcmp.eq.f32.partialorder %v424, 0.0
        %v515 = vand.u32 %v424, 2147483648
        %v516 = vsel %vm514, %v515, %v513
        %v517 = vrsqrt.pop %v427
        %v518 = vmul.f32 %v427, %v517
        %vm519 = vcmp.eq.f32.partialorder %v427, inf
        %v520 = vsel %vm519, %v427, %v518
        %vm521 = vcmp.eq.f32.partialorder %v427, 0.0
        %v522 = vand.u32 %v427, 2147483648
        %v523 = vsel %vm521, %v522, %v520
        %v524 = vrsqrt.pop %v430
        %v525 = vmul.f32 %v430, %v524
        %vm526 = vcmp.eq.f32.partialorder %v430, inf
        %v527 = vsel %vm526, %v430, %v525
        %vm528 = vcmp.eq.f32.partialorder %v430, 0.0
        %v529 = vand.u32 %v430, 2147483648
        %v530 = vsel %vm528, %v529, %v527
        %v531 = vrsqrt.pop %v433
        %v532 = vmul.f32 %v433, %v531
        %vm533 = vcmp.eq.f32.partialorder %v433, inf
        %v534 = vsel %vm533, %v433, %v532
        %vm535 = vcmp.eq.f32.partialorder %v433, 0.0
        %v536 = vand.u32 %v433, 2147483648
        %v537 = vsel %vm535, %v536, %v534
        %v538 = vrsqrt.pop %v436
        %v539 = vmul.f32 %v436, %v538
        %vm540 = vcmp.eq.f32.partialorder %v436, inf
        %v541 = vsel %vm540, %v436, %v539
        %vm542 = vcmp.eq.f32.partialorder %v436, 0.0
        %v543 = vand.u32 %v436, 2147483648
        %v544 = vsel %vm542, %v543, %v541
        %v545 = vrsqrt.pop %v439
        %v546 = vmul.f32 %v439, %v545
        %vm547 = vcmp.eq.f32.partialorder %v439, inf
        %v548 = vsel %vm547, %v439, %v546
        %vm549 = vcmp.eq.f32.partialorder %v439, 0.0
        %v550 = vand.u32 %v439, 2147483648
        %v551 = vsel %vm549, %v550, %v548
        %v552 = vmax.f32 %v446, 1e-12
        %v553 = vmax.f32 %v453, 1e-12
        %v554 = vmax.f32 %v460, 1e-12
        %v555 = vmax.f32 %v467, 1e-12
        %v556 = vmax.f32 %v474, 1e-12
        %v557 = vmax.f32 %v481, 1e-12
        %v558 = vmax.f32 %v488, 1e-12
        %v559 = vmax.f32 %v495, 1e-12
        %v560 = vmax.f32 %v502, 1e-12
        %v561 = vmax.f32 %v509, 1e-12
        %v562 = vmax.f32 %v516, 1e-12
        %v563 = vmax.f32 %v523, 1e-12
        %v564 = vmax.f32 %v530, 1e-12
        %v565 = vmax.f32 %v537, 1e-12
        %v566 = vmax.f32 %v544, 1e-12
        %v567 = vmax.f32 %v551, 1e-12
        %v568 = vrcp.pop %v552
        %v569 = vmul.f32 30.0, %v568
        %v570 = vrcp.pop %v553
        %v571 = vmul.f32 30.0, %v570
        %v572 = vrcp.pop %v554
        %v573 = vmul.f32 30.0, %v572
        %v574 = vrcp.pop %v555
        %v575 = vmul.f32 30.0, %v574
        %v576 = vrcp.pop %v556
        %v577 = vmul.f32 30.0, %v576
        %v578 = vrcp.pop %v557
        %v579 = vmul.f32 30.0, %v578
        %v580 = vrcp.pop %v558
        %v581 = vmul.f32 30.0, %v580
        %v582 = vrcp.pop %v559
        %v583 = vmul.f32 30.0, %v582
        %v584 = vrcp.pop %v560
        %v585 = vmul.f32 30.0, %v584
        %v586 = vrcp.pop %v561
        %v587 = vmul.f32 30.0, %v586
        %v588 = vrcp.pop %v562
        %v589 = vmul.f32 30.0, %v588
        %v590 = vrcp.pop %v563
        %v591 = vmul.f32 30.0, %v590
        %v592 = vrcp.pop %v564
        %v593 = vmul.f32 30.0, %v592
        %v594 = vrcp.pop %v565
        %v595 = vmul.f32 30.0, %v594
        %v596 = vrcp.pop %v566
        %v597 = vmul.f32 30.0, %v596
        %v598 = vrcp.pop %v567
        %v599 = vmul.f32 30.0, %v598
        %v600 = vmul.f32 %v326, %v569
        %v601 = vmul.f32 %v327, %v571
        %v602 = vmul.f32 %v328, %v573
        %v603 = vmul.f32 %v329, %v575
        %v604 = vmul.f32 %v330, %v577
        %v605 = vmul.f32 %v331, %v579
        %v606 = vmul.f32 %v332, %v581
        %v607 = vmul.f32 %v333, %v583
        %v608 = vmul.f32 %v334, %v585
        %v609 = vmul.f32 %v335, %v587
        %v610 = vmul.f32 %v336, %v589
        %v611 = vmul.f32 %v337, %v591
        %v612 = vmul.f32 %v338, %v593
        %v613 = vmul.f32 %v339, %v595
        %v614 = vmul.f32 %v340, %v597
        %v615 = vmul.f32 %v341, %v599
        %v617 = vsel %vm391, %v600, 0
        %v620 = vsel %vm391, %v601, 0
        %v623 = vsel %vm391, %v602, 0
        %v626 = vsel %vm391, %v603, 0
        %v629 = vsel %vm391, %v604, 0
        %v632 = vsel %vm391, %v605, 0
        %v635 = vsel %vm391, %v606, 0
        %v638 = vsel %vm391, %v607, 0
        %v641 = vsel %vm391, %v608, 0
        %v644 = vsel %vm391, %v609, 0
        %v647 = vsel %vm391, %v610, 0
        %v650 = vsel %vm391, %v611, 0
        %v653 = vsel %vm391, %v612, 0
        %v656 = vsel %vm391, %v613, 0
        %v659 = vsel %vm391, %v614, 0
        %v662 = vsel %vm391, %v615, 0
        %v664 = vand.u32 %v343, 4294901760
        %665 = vmatprep.subr.mxu0 %v664
        %v666 = vand.u32 %v342, 4294901760
        %667 = vmatpush1.msra.mxu0 %v666
        %v668 = vand.u32 %v345, 4294901760
        %669 = vmatprep.subr.mxu0 %v668
        %v670 = vand.u32 %v344, 4294901760
        %671 = vmatpush1.msra.mxu0 %v670
        %v672 = vand.u32 %v347, 4294901760
        %673 = vmatprep.subr.mxu0 %v672
        %v674 = vand.u32 %v346, 4294901760
        %675 = vmatpush1.msra.mxu0 %v674
        %v676 = vand.u32 %v349, 4294901760
        %677 = vmatprep.subr.mxu0 %v676
        %v678 = vand.u32 %v348, 4294901760
        %679 = vmatpush1.msra.mxu0 %v678
        %v680 = vand.u32 %v351, 4294901760
        %681 = vmatprep.subr.mxu0 %v680
        %v682 = vand.u32 %v350, 4294901760
        %683 = vmatpush1.msra.mxu0 %v682
        %v684 = vand.u32 %v353, 4294901760
        %685 = vmatprep.subr.mxu0 %v684
        %v686 = vand.u32 %v352, 4294901760
        %687 = vmatpush1.msra.mxu0 %v686
        %v688 = vand.u32 %v355, 4294901760
        %689 = vmatprep.subr.mxu0 %v688
        %v690 = vand.u32 %v354, 4294901760
        %691 = vmatpush1.msra.mxu0 %v690
        %v692 = vand.u32 %v357, 4294901760
        %693 = vmatprep.subr.mxu0 %v692
        %v694 = vand.u32 %v356, 4294901760
        %695 = vmatpush1.msra.mxu0 %v694
        %696 = vmatprep.subr.mxu0 0.0
        %697 = vmatpush1.msra.mxu0 0.0
        %698 = vmatprep.subr.mxu0 0.0
        %699 = vmatpush1.msra.mxu0 0.0
        %700 = vmatprep.subr.mxu0 0.0
        %701 = vmatpush1.msra.mxu0 0.0
        %702 = vmatprep.subr.mxu0 0.0
        %703 = vmatpush1.msra.mxu0 0.0
        %704 = vmatprep.subr.mxu0 0.0
        %705 = vmatpush1.msra.mxu0 0.0
        %706 = vmatprep.subr.mxu0 0.0
        %707 = vmatpush1.msra.mxu0 0.0
        %708 = vmatprep.subr.mxu0 0.0
        %709 = vmatpush1.msra.mxu0 0.0
        %710 = vmatprep.subr.mxu0 0.0
        %711 = vmatpush1.msra.mxu0 0.0
        %712 = vmatprep.subr.mxu0 0.0
        %713 = vmatpush1.msra.mxu0 0.0
        %714 = vmatprep.subr.mxu0 0.0
        %715 = vmatpush1.msra.mxu0 0.0
        %716 = vmatprep.subr.mxu0 0.0
        %717 = vmatpush1.msra.mxu0 0.0
        %718 = vmatprep.subr.mxu0 0.0
        %719 = vmatpush1.msra.mxu0 0.0
        %720 = vmatprep.subr.mxu0 0.0
        %721 = vmatpush1.msra.mxu0 0.0
        %722 = vmatprep.subr.mxu0 0.0
        %723 = vmatpush1.msra.mxu0 0.0
        %724 = vmatprep.subr.mxu0 0.0
        %725 = vmatpush1.msra.mxu0 0.0
        %726 = vmatprep.subr.mxu0 0.0
        %727 = vmatpush1.msra.mxu0 0.0
        %728 = vmatprep.subr.mxu0 0.0
        %729 = vmatpush1.msra.mxu0 0.0
        %730 = vmatprep.subr.mxu0 0.0
        %731 = vmatpush1.msra.mxu0 0.0
        %732 = vmatprep.subr.mxu0 0.0
        %733 = vmatpush1.msra.mxu0 0.0
        %734 = vmatprep.subr.mxu0 0.0
        %735 = vmatpush1.msra.mxu0 0.0
        %736 = vmatprep.subr.mxu0 0.0
        %737 = vmatpush1.msra.mxu0 0.0
        %738 = vmatprep.subr.mxu0 0.0
        %739 = vmatpush1.msra.mxu0 0.0
        %740 = vmatprep.subr.mxu0 0.0
        %741 = vmatpush1.msra.mxu0 0.0
        %742 = vmatprep.subr.mxu0 0.0
        %743 = vmatpush1.msra.mxu0 0.0
        %744 = vmatprep.mubr.f32.mxu0 0.0
        %v745 = vand.u32 %v617, 4294901760
        %v746 = vsub.f32 %v617, %v745
        %v747 = vand.u32 %v746, 4294901760
        %v748 = vsub.f32 %v746, %v747
        %v749 = vand.u32 %v748, 4294901760
        %750 = vmatmul.mubr.f32.gmra.mrb[0].mxu0 %v749
        %v751 = vpop.f32.mrb[0].mxu0
        %v752 = vadd.f32 0.0, %v751
        %v753 = vpop.f32.mrb[0].mxu0
        %v754 = vadd.f32 0.0, %v753
        %755 = vmatprep.mubr.f32.mxu0 0.0
        %v756 = vand.u32 %v620, 4294901760
        %v757 = vsub.f32 %v620, %v756
        %v758 = vand.u32 %v757, 4294901760
        %v759 = vsub.f32 %v757, %v758
        %v760 = vand.u32 %v759, 4294901760
        %761 = vmatmul.mubr.f32.gmra.mrb[0].mxu0 %v760
        %v762 = vpop.f32.mrb[0].mxu0
        %v763 = vadd.f32 0.0, %v762
        %v764 = vpop.f32.mrb[0].mxu0
        %v765 = vadd.f32 0.0, %v764
        %766 = vmatprep.mubr.f32.mxu0 0.0
        %v767 = vand.u32 %v623, 4294901760
        %v768 = vsub.f32 %v623, %v767
        %v769 = vand.u32 %v768, 4294901760
        %v770 = vsub.f32 %v768, %v769
        %v771 = vand.u32 %v770, 4294901760
        %772 = vmatmul.mubr.f32.gmra.mrb[0].mxu0 %v771
        %v773 = vpop.f32.mrb[0].mxu0
        %v774 = vadd.f32 0.0, %v773
        %v775 = vpop.f32.mrb[0].mxu0
        %v776 = vadd.f32 0.0, %v775
        %777 = vmatprep.mubr.f32.mxu0 0.0
        %v778 = vand.u32 %v626, 4294901760
        %v779 = vsub.f32 %v626, %v778
        %v780 = vand.u32 %v779, 4294901760
        %v781 = vsub.f32 %v779, %v780
        %v782 = vand.u32 %v781, 4294901760
        %783 = vmatmul.mubr.f32.gmra.mrb[0].mxu0 %v782
        %v784 = vpop.f32.mrb[0].mxu0
        %v785 = vadd.f32 0.0, %v784
        %v786 = vpop.f32.mrb[0].mxu0
        %v787 = vadd.f32 0.0, %v786
        %788 = vmatprep.mubr.f32.mxu0 0.0
        %v789 = vand.u32 %v629, 4294901760
        %v790 = vsub.f32 %v629, %v789
        %v791 = vand.u32 %v790, 4294901760
        %v792 = vsub.f32 %v790, %v791
        %v793 = vand.u32 %v792, 4294901760
        %794 = vmatmul.mubr.f32.gmra.mrb[0].mxu0 %v793
        %v795 = vpop.f32.mrb[0].mxu0
        %v796 = vadd.f32 0.0, %v795
        %v797 = vpop.f32.mrb[0].mxu0
        %v798 = vadd.f32 0.0, %v797
        %799 = vmatprep.mubr.f32.mxu0 0.0
        %v800 = vand.u32 %v632, 4294901760
        %v801 = vsub.f32 %v632, %v800
        %v802 = vand.u32 %v801, 4294901760
        %v803 = vsub.f32 %v801, %v802
        %v804 = vand.u32 %v803, 4294901760
        %805 = vmatmul.mubr.f32.gmra.mrb[0].mxu0 %v804
        %v806 = vpop.f32.mrb[0].mxu0
        %v807 = vadd.f32 0.0, %v806
        %v808 = vpop.f32.mrb[0].mxu0
        %v809 = vadd.f32 0.0, %v808
        %810 = vmatprep.mubr.f32.mxu0 0.0
        %v811 = vand.u32 %v635, 4294901760
        %v812 = vsub.f32 %v635, %v811
        %v813 = vand.u32 %v812, 4294901760
        %v814 = vsub.f32 %v812, %v813
        %v815 = vand.u32 %v814, 4294901760
        %816 = vmatmul.mubr.f32.gmra.mrb[0].mxu0 %v815
        %v817 = vpop.f32.mrb[0].mxu0
        %v818 = vadd.f32 0.0, %v817
        %v819 = vpop.f32.mrb[0].mxu0
        %v820 = vadd.f32 0.0, %v819
        %821 = vmatprep.mubr.f32.mxu0 0.0
        %v822 = vand.u32 %v638, 4294901760
        %v823 = vsub.f32 %v638, %v822
        %v824 = vand.u32 %v823, 4294901760
        %v825 = vsub.f32 %v823, %v824
        %v826 = vand.u32 %v825, 4294901760
        %827 = vmatmul.mubr.f32.gmra.mrb[0].mxu0 %v826
        %v828 = vpop.f32.mrb[0].mxu0
        %v829 = vadd.f32 0.0, %v828
        %v830 = vpop.f32.mrb[0].mxu0
        %v831 = vadd.f32 0.0, %v830
        %832 = vmatprep.mubr.f32.mxu0 0.0
        %v833 = vand.u32 %v641, 4294901760
        %v834 = vsub.f32 %v641, %v833
        %v835 = vand.u32 %v834, 4294901760
        %v836 = vsub.f32 %v834, %v835
        %v837 = vand.u32 %v836, 4294901760
        %838 = vmatmul.mubr.f32.gmra.mrb[0].mxu0 %v837
        %v839 = vpop.f32.mrb[0].mxu0
        %v840 = vadd.f32 0.0, %v839
        %v841 = vpop.f32.mrb[0].mxu0
        %v842 = vadd.f32 0.0, %v841
        %843 = vmatprep.mubr.f32.mxu0 0.0
        %v844 = vand.u32 %v644, 4294901760
        %v845 = vsub.f32 %v644, %v844
        %v846 = vand.u32 %v845, 4294901760
        %v847 = vsub.f32 %v845, %v846
        %v848 = vand.u32 %v847, 4294901760
        %849 = vmatmul.mubr.f32.gmra.mrb[0].mxu0 %v848
        %v850 = vpop.f32.mrb[0].mxu0
        %v851 = vadd.f32 0.0, %v850
        %v852 = vpop.f32.mrb[0].mxu0
        %v853 = vadd.f32 0.0, %v852
        %854 = vmatprep.mubr.f32.mxu0 0.0
        %v855 = vand.u32 %v647, 4294901760
        %v856 = vsub.f32 %v647, %v855
        %v857 = vand.u32 %v856, 4294901760
        %v858 = vsub.f32 %v856, %v857
        %v859 = vand.u32 %v858, 4294901760
        %860 = vmatmul.mubr.f32.gmra.mrb[0].mxu0 %v859
        %v861 = vpop.f32.mrb[0].mxu0
        %v862 = vadd.f32 0.0, %v861
        %v863 = vpop.f32.mrb[0].mxu0
        %v864 = vadd.f32 0.0, %v863
        %865 = vmatprep.mubr.f32.mxu0 0.0
        %v866 = vand.u32 %v650, 4294901760
        %v867 = vsub.f32 %v650, %v866
        %v868 = vand.u32 %v867, 4294901760
        %v869 = vsub.f32 %v867, %v868
        %v870 = vand.u32 %v869, 4294901760
        %871 = vmatmul.mubr.f32.gmra.mrb[0].mxu0 %v870
        %v872 = vpop.f32.mrb[0].mxu0
        %v873 = vadd.f32 0.0, %v872
        %v874 = vpop.f32.mrb[0].mxu0
        %v875 = vadd.f32 0.0, %v874
        %876 = vmatprep.mubr.f32.mxu0 0.0
        %v877 = vand.u32 %v653, 4294901760
        %v878 = vsub.f32 %v653, %v877
        %v879 = vand.u32 %v878, 4294901760
        %v880 = vsub.f32 %v878, %v879
        %v881 = vand.u32 %v880, 4294901760
        %882 = vmatmul.mubr.f32.gmra.mrb[0].mxu0 %v881
        %v883 = vpop.f32.mrb[0].mxu0
        %v884 = vadd.f32 0.0, %v883
        %v885 = vpop.f32.mrb[0].mxu0
        %v886 = vadd.f32 0.0, %v885
        %887 = vmatprep.mubr.f32.mxu0 0.0
        %v888 = vand.u32 %v656, 4294901760
        %v889 = vsub.f32 %v656, %v888
        %v890 = vand.u32 %v889, 4294901760
        %v891 = vsub.f32 %v889, %v890
        %v892 = vand.u32 %v891, 4294901760
        %893 = vmatmul.mubr.f32.gmra.mrb[0].mxu0 %v892
        %v894 = vpop.f32.mrb[0].mxu0
        %v895 = vadd.f32 0.0, %v894
        %v896 = vpop.f32.mrb[0].mxu0
        %v897 = vadd.f32 0.0, %v896
        %898 = vmatprep.mubr.f32.mxu0 0.0
        %v899 = vand.u32 %v659, 4294901760
        %v900 = vsub.f32 %v659, %v899
        %v901 = vand.u32 %v900, 4294901760
        %v902 = vsub.f32 %v900, %v901
        %v903 = vand.u32 %v902, 4294901760
        %904 = vmatmul.mubr.f32.gmra.mrb[0].mxu0 %v903
        %v905 = vpop.f32.mrb[0].mxu0
        %v906 = vadd.f32 0.0, %v905
        %v907 = vpop.f32.mrb[0].mxu0
        %v908 = vadd.f32 0.0, %v907
        %909 = vmatprep.mubr.f32.mxu0 0.0
        %v910 = vand.u32 %v662, 4294901760
        %v911 = vsub.f32 %v662, %v910
        %v912 = vand.u32 %v911, 4294901760
        %v913 = vsub.f32 %v911, %v912
        %v914 = vand.u32 %v913, 4294901760
        %915 = vmatmul.mubr.f32.gmra.mrb[0].mxu0 %v914
        %v916 = vpop.f32.mrb[0].mxu0
        %v917 = vadd.f32 0.0, %v916
        %v918 = vpop.f32.mrb[0].mxu0
        %v919 = vadd.f32 0.0, %v918
        %920 = vdwg.mxu0
        %v921 = vand.u32 %v343, 4294901760
        %v922 = vsub.f32 %v343, %v921
        %v923 = vand.u32 %v922, 4294901760
        %v924 = vsub.f32 %v922, %v923
        %v925 = vand.u32 %v924, 4294901760
        %926 = vmatprep.subr.mxu0 %v925
        %v927 = vand.u32 %v342, 4294901760
        %v928 = vsub.f32 %v342, %v927
        %v929 = vand.u32 %v928, 4294901760
        %v930 = vsub.f32 %v928, %v929
        %v931 = vand.u32 %v930, 4294901760
        %932 = vmatpush1.msra.mxu0 %v931
        %v933 = vand.u32 %v345, 4294901760
        %v934 = vsub.f32 %v345, %v933
        %v935 = vand.u32 %v934, 4294901760
        %v936 = vsub.f32 %v934, %v935
        %v937 = vand.u32 %v936, 4294901760
        %938 = vmatprep.subr.mxu0 %v937
        %v939 = vand.u32 %v344, 4294901760
        %v940 = vsub.f32 %v344, %v939
        %v941 = vand.u32 %v940, 4294901760
        %v942 = vsub.f32 %v940, %v941
        %v943 = vand.u32 %v942, 4294901760
        %944 = vmatpush1.msra.mxu0 %v943
        %v945 = vand.u32 %v347, 4294901760
        %v946 = vsub.f32 %v347, %v945
        %v947 = vand.u32 %v946, 4294901760
        %v948 = vsub.f32 %v946, %v947
        %v949 = vand.u32 %v948, 4294901760
        %950 = vmatprep.subr.mxu0 %v949
        %v951 = vand.u32 %v346, 4294901760
        %v952 = vsub.f32 %v346, %v951
        %v953 = vand.u32 %v952, 4294901760
        %v954 = vsub.f32 %v952, %v953
        %v955 = vand.u32 %v954, 4294901760
        %956 = vmatpush1.msra.mxu0 %v955
        %v957 = vand.u32 %v349, 4294901760
        %v958 = vsub.f32 %v349, %v957
        %v959 = vand.u32 %v958, 4294901760
        %v960 = vsub.f32 %v958, %v959
        %v961 = vand.u32 %v960, 4294901760
        %962 = vmatprep.subr.mxu0 %v961
        %v963 = vand.u32 %v348, 4294901760
        %v964 = vsub.f32 %v348, %v963
        %v965 = vand.u32 %v964, 4294901760
        %v966 = vsub.f32 %v964, %v965
        %v967 = vand.u32 %v966, 4294901760
        %968 = vmatpush1.msra.mxu0 %v967
        %v969 = vand.u32 %v351, 4294901760
        %v970 = vsub.f32 %v351, %v969
        %v971 = vand.u32 %v970, 4294901760
        %v972 = vsub.f32 %v970, %v971
        %v973 = vand.u32 %v972, 4294901760
        %974 = vmatprep.subr.mxu0 %v973
        %v975 = vand.u32 %v350, 4294901760
        %v976 = vsub.f32 %v350, %v975
        %v977 = vand.u32 %v976, 4294901760
        %v978 = vsub.f32 %v976, %v977
        %v979 = vand.u32 %v978, 4294901760
        %980 = vmatpush1.msra.mxu0 %v979
        %v981 = vand.u32 %v353, 4294901760
        %v982 = vsub.f32 %v353, %v981
        %v983 = vand.u32 %v982, 4294901760
        %v984 = vsub.f32 %v982, %v983
        %v985 = vand.u32 %v984, 4294901760
        %986 = vmatprep.subr.mxu0 %v985
        %v987 = vand.u32 %v352, 4294901760
        %v988 = vsub.f32 %v352, %v987
        %v989 = vand.u32 %v988, 4294901760
        %v990 = vsub.f32 %v988, %v989
        %v991 = vand.u32 %v990, 4294901760
        %992 = vmatpush1.msra.mxu0 %v991
        %v993 = vand.u32 %v355, 4294901760
        %v994 = vsub.f32 %v355, %v993
        %v995 = vand.u32 %v994, 4294901760
        %v996 = vsub.f32 %v994, %v995
        %v997 = vand.u32 %v996, 4294901760
        %998 = vmatprep.subr.mxu0 %v997
        %v999 = vand.u32 %v354, 4294901760
        %v1000 = vsub.f32 %v354, %v999
        %v1001 = vand.u32 %v1000, 4294901760
        %v1002 = vsub.f32 %v1000, %v1001
        %v1003 = vand.u32 %v1002, 4294901760
        %1004 = vmatpush1.msra.mxu0 %v1003
        %v1005 = vand.u32 %v357, 4294901760
        %v1006 = vsub.f32 %v357, %v1005
        %v1007 = vand.u32 %v1006, 4294901760
        %v1008 = vsub.f32 %v1006, %v1007
        %v1009 = vand.u32 %v1008, 4294901760
        %1010 = vmatprep.subr.mxu0 %v1009
        %v1011 = vand.u32 %v356, 4294901760
        %v1012 = vsub.f32 %v356, %v1011
        %v1013 = vand.u32 %v1012, 4294901760
        %v1014 = vsub.f32 %v1012, %v1013
        %v1015 = vand.u32 %v1014, 4294901760
        %1016 = vmatpush1.msra.mxu0 %v1015
        %1017 = vmatprep.subr.mxu0 0.0
        %1018 = vmatpush1.msra.mxu0 0.0
        %1019 = vmatprep.subr.mxu0 0.0
        %1020 = vmatpush1.msra.mxu0 0.0
        %1021 = vmatprep.subr.mxu0 0.0
        %1022 = vmatpush1.msra.mxu0 0.0
        %1023 = vmatprep.subr.mxu0 0.0
        %1024 = vmatpush1.msra.mxu0 0.0
        %1025 = vmatprep.subr.mxu0 0.0
        %1026 = vmatpush1.msra.mxu0 0.0
        %1027 = vmatprep.subr.mxu0 0.0
        %1028 = vmatpush1.msra.mxu0 0.0
        %1029 = vmatprep.subr.mxu0 0.0
        %1030 = vmatpush1.msra.mxu0 0.0
        %1031 = vmatprep.subr.mxu0 0.0
        %1032 = vmatpush1.msra.mxu0 0.0
        %1033 = vmatprep.subr.mxu0 0.0
        %1034 = vmatpush1.msra.mxu0 0.0
        %1035 = vmatprep.subr.mxu0 0.0
        %1036 = vmatpush1.msra.mxu0 0.0
        %1037 = vmatprep.subr.mxu0 0.0
        %1038 = vmatpush1.msra.mxu0 0.0
        %1039 = vmatprep.subr.mxu0 0.0
        %1040 = vmatpush1.msra.mxu0 0.0
        %1041 = vmatprep.subr.mxu0 0.0
        %1042 = vmatpush1.msra.mxu0 0.0
        %1043 = vmatprep.subr.mxu0 0.0
        %1044 = vmatpush1.msra.mxu0 0.0
        %1045 = vmatprep.subr.mxu0 0.0
        %1046 = vmatpush1.msra.mxu0 0.0
        %1047 = vmatprep.subr.mxu0 0.0
        %1048 = vmatpush1.msra.mxu0 0.0
        %1049 = vmatprep.subr.mxu0 0.0
        %1050 = vmatpush1.msra.mxu0 0.0
        %1051 = vmatprep.subr.mxu0 0.0
        %1052 = vmatpush1.msra.mxu0 0.0
        %1053 = vmatprep.subr.mxu0 0.0
        %1054 = vmatpush1.msra.mxu0 0.0
        %1055 = vmatprep.subr.mxu0 0.0
        %1056 = vmatpush1.msra.mxu0 0.0
        %1057 = vmatprep.subr.mxu0 0.0
        %1058 = vmatpush1.msra.mxu0 0.0
        %1059 = vmatprep.subr.mxu0 0.0
        %1060 = vmatpush1.msra.mxu0 0.0
        %1061 = vmatprep.subr.mxu0 0.0
        %1062 = vmatpush1.msra.mxu0 0.0
        %1063 = vmatprep.subr.mxu0 0.0
        %1064 = vmatpush1.msra.mxu0 0.0
        %1065 = vmatprep.mubr.f32.mxu0 0.0
        %v1066 = vand.u32 %v617, 4294901760
        %1067 = vmatmul.mubr.f32.gmra.mrb[0].mxu0 %v1066
        %v1068 = vpop.f32.mrb[0].mxu0
        %v1069 = vadd.f32 %v752, %v1068
        %v1070 = vpop.f32.mrb[0].mxu0
        %v1071 = vadd.f32 %v754, %v1070
        %1072 = vmatprep.mubr.f32.mxu0 0.0
        %v1073 = vand.u32 %v620, 4294901760
        %1074 = vmatmul.mubr.f32.gmra.mrb[0].mxu0 %v1073
        %v1075 = vpop.f32.mrb[0].mxu0
        %v1076 = vadd.f32 %v763, %v1075
        %v1077 = vpop.f32.mrb[0].mxu0
        %v1078 = vadd.f32 %v765, %v1077
        %1079 = vmatprep.mubr.f32.mxu0 0.0
        %v1080 = vand.u32 %v623, 4294901760
        %1081 = vmatmul.mubr.f32.gmra.mrb[0].mxu0 %v1080
        %v1082 = vpop.f32.mrb[0].mxu0
        %v1083 = vadd.f32 %v774, %v1082
        %v1084 = vpop.f32.mrb[0].mxu0
        %v1085 = vadd.f32 %v776, %v1084
        %1086 = vmatprep.mubr.f32.mxu0 0.0
        %v1087 = vand.u32 %v626, 4294901760
        %1088 = vmatmul.mubr.f32.gmra.mrb[0].mxu0 %v1087
        %v1089 = vpop.f32.mrb[0].mxu0
        %v1090 = vadd.f32 %v785, %v1089
        %v1091 = vpop.f32.mrb[0].mxu0
        %v1092 = vadd.f32 %v787, %v1091
        %1093 = vmatprep.mubr.f32.mxu0 0.0
        %v1094 = vand.u32 %v629, 4294901760
        %1095 = vmatmul.mubr.f32.gmra.mrb[0].mxu0 %v1094
        %v1096 = vpop.f32.mrb[0].mxu0
        %v1097 = vadd.f32 %v796, %v1096
        %v1098 = vpop.f32.mrb[0].mxu0
        %v1099 = vadd.f32 %v798, %v1098
        %1100 = vmatprep.mubr.f32.mxu0 0.0
        %v1101 = vand.u32 %v632, 4294901760
        %1102 = vmatmul.mubr.f32.gmra.mrb[0].mxu0 %v1101
        %v1103 = vpop.f32.mrb[0].mxu0
        %v1104 = vadd.f32 %v807, %v1103
        %v1105 = vpop.f32.mrb[0].mxu0
        %v1106 = vadd.f32 %v809, %v1105
        %1107 = vmatprep.mubr.f32.mxu0 0.0
        %v1108 = vand.u32 %v635, 4294901760
        %1109 = vmatmul.mubr.f32.gmra.mrb[0].mxu0 %v1108
        %v1110 = vpop.f32.mrb[0].mxu0
        %v1111 = vadd.f32 %v818, %v1110
        %v1112 = vpop.f32.mrb[0].mxu0
        %v1113 = vadd.f32 %v820, %v1112
        %1114 = vmatprep.mubr.f32.mxu0 0.0
        %v1115 = vand.u32 %v638, 4294901760
        %1116 = vmatmul.mubr.f32.gmra.mrb[0].mxu0 %v1115
        %v1117 = vpop.f32.mrb[0].mxu0
        %v1118 = vadd.f32 %v829, %v1117
        %v1119 = vpop.f32.mrb[0].mxu0
        %v1120 = vadd.f32 %v831, %v1119
        %1121 = vmatprep.mubr.f32.mxu0 0.0
        %v1122 = vand.u32 %v641, 4294901760
        %1123 = vmatmul.mubr.f32.gmra.mrb[0].mxu0 %v1122
        %v1124 = vpop.f32.mrb[0].mxu0
        %v1125 = vadd.f32 %v840, %v1124
        %v1126 = vpop.f32.mrb[0].mxu0
        %v1127 = vadd.f32 %v842, %v1126
        %1128 = vmatprep.mubr.f32.mxu0 0.0
        %v1129 = vand.u32 %v644, 4294901760
        %1130 = vmatmul.mubr.f32.gmra.mrb[0].mxu0 %v1129
        %v1131 = vpop.f32.mrb[0].mxu0
        %v1132 = vadd.f32 %v851, %v1131
        %v1133 = vpop.f32.mrb[0].mxu0
        %v1134 = vadd.f32 %v853, %v1133
        %1135 = vmatprep.mubr.f32.mxu0 0.0
        %v1136 = vand.u32 %v647, 4294901760
        %1137 = vmatmul.mubr.f32.gmra.mrb[0].mxu0 %v1136
        %v1138 = vpop.f32.mrb[0].mxu0
        %v1139 = vadd.f32 %v862, %v1138
        %v1140 = vpop.f32.mrb[0].mxu0
        %v1141 = vadd.f32 %v864, %v1140
        %1142 = vmatprep.mubr.f32.mxu0 0.0
        %v1143 = vand.u32 %v650, 4294901760
        %1144 = vmatmul.mubr.f32.gmra.mrb[0].mxu0 %v1143
        %v1145 = vpop.f32.mrb[0].mxu0
        %v1146 = vadd.f32 %v873, %v1145
        %v1147 = vpop.f32.mrb[0].mxu0
        %v1148 = vadd.f32 %v875, %v1147
        %1149 = vmatprep.mubr.f32.mxu0 0.0
        %v1150 = vand.u32 %v653, 4294901760
        %1151 = vmatmul.mubr.f32.gmra.mrb[0].mxu0 %v1150
        %v1152 = vpop.f32.mrb[0].mxu0
        %v1153 = vadd.f32 %v884, %v1152
        %v1154 = vpop.f32.mrb[0].mxu0
        %v1155 = vadd.f32 %v886, %v1154
        %1156 = vmatprep.mubr.f32.mxu0 0.0
        %v1157 = vand.u32 %v656, 4294901760
        %1158 = vmatmul.mubr.f32.gmra.mrb[0].mxu0 %v1157
        %v1159 = vpop.f32.mrb[0].mxu0
        %v1160 = vadd.f32 %v895, %v1159
        %v1161 = vpop.f32.mrb[0].mxu0
        %v1162 = vadd.f32 %v897, %v1161
        %1163 = vmatprep.mubr.f32.mxu0 0.0
        %v1164 = vand.u32 %v659, 4294901760
        %1165 = vmatmul.mubr.f32.gmra.mrb[0].mxu0 %v1164
        %v1166 = vpop.f32.mrb[0].mxu0
        %v1167 = vadd.f32 %v906, %v1166
        %v1168 = vpop.f32.mrb[0].mxu0
        %v1169 = vadd.f32 %v908, %v1168
        %1170 = vmatprep.mubr.f32.mxu0 0.0
        %v1171 = vand.u32 %v662, 4294901760
        %1172 = vmatmul.mubr.f32.gmra.mrb[0].mxu0 %v1171
        %v1173 = vpop.f32.mrb[0].mxu0
        %v1174 = vadd.f32 %v917, %v1173
        %v1175 = vpop.f32.mrb[0].mxu0
        %v1176 = vadd.f32 %v919, %v1175
        %1177 = vdwg.mxu0
        %v1178 = vand.u32 %v343, 4294901760
        %v1179 = vsub.f32 %v343, %v1178
        %1180 = vmatprep.subr.mxu0 %v1179
        %v1181 = vand.u32 %v342, 4294901760
        %v1182 = vsub.f32 %v342, %v1181
        %1183 = vmatpush1.msra.mxu0 %v1182
        %v1184 = vand.u32 %v345, 4294901760
        %v1185 = vsub.f32 %v345, %v1184
        %1186 = vmatprep.subr.mxu0 %v1185
        %v1187 = vand.u32 %v344, 4294901760
        %v1188 = vsub.f32 %v344, %v1187
        %1189 = vmatpush1.msra.mxu0 %v1188
        %v1190 = vand.u32 %v347, 4294901760
        %v1191 = vsub.f32 %v347, %v1190
        %1192 = vmatprep.subr.mxu0 %v1191
        %v1193 = vand.u32 %v346, 4294901760
        %v1194 = vsub.f32 %v346, %v1193
        %1195 = vmatpush1.msra.mxu0 %v1194
        %v1196 = vand.u32 %v349, 4294901760
        %v1197 = vsub.f32 %v349, %v1196
        %1198 = vmatprep.subr.mxu0 %v1197
        %v1199 = vand.u32 %v348, 4294901760
        %v1200 = vsub.f32 %v348, %v1199
        %1201 = vmatpush1.msra.mxu0 %v1200
        %v1202 = vand.u32 %v351, 4294901760
        %v1203 = vsub.f32 %v351, %v1202
        %1204 = vmatprep.subr.mxu0 %v1203
        %v1205 = vand.u32 %v350, 4294901760
        %v1206 = vsub.f32 %v350, %v1205
        %1207 = vmatpush1.msra.mxu0 %v1206
        %v1208 = vand.u32 %v353, 4294901760
        %v1209 = vsub.f32 %v353, %v1208
        %1210 = vmatprep.subr.mxu0 %v1209
        %v1211 = vand.u32 %v352, 4294901760
        %v1212 = vsub.f32 %v352, %v1211
        %1213 = vmatpush1.msra.mxu0 %v1212
        %v1214 = vand.u32 %v355, 4294901760
        %v1215 = vsub.f32 %v355, %v1214
        %1216 = vmatprep.subr.mxu0 %v1215
        %v1217 = vand.u32 %v354, 4294901760
        %v1218 = vsub.f32 %v354, %v1217
        %1219 = vmatpush1.msra.mxu0 %v1218
        %v1220 = vand.u32 %v357, 4294901760
        %v1221 = vsub.f32 %v357, %v1220
        %1222 = vmatprep.subr.mxu0 %v1221
        %v1223 = vand.u32 %v356, 4294901760
        %v1224 = vsub.f32 %v356, %v1223
        %1225 = vmatpush1.msra.mxu0 %v1224
        %1226 = vmatprep.subr.mxu0 0.0
        %1227 = vmatpush1.msra.mxu0 0.0
        %1228 = vmatprep.subr.mxu0 0.0
        %1229 = vmatpush1.msra.mxu0 0.0
        %1230 = vmatprep.subr.mxu0 0.0
        %1231 = vmatpush1.msra.mxu0 0.0
        %1232 = vmatprep.subr.mxu0 0.0
        %1233 = vmatpush1.msra.mxu0 0.0
        %1234 = vmatprep.subr.mxu0 0.0
        %1235 = vmatpush1.msra.mxu0 0.0
        %1236 = vmatprep.subr.mxu0 0.0
        %1237 = vmatpush1.msra.mxu0 0.0
        %1238 = vmatprep.subr.mxu0 0.0
        %1239 = vmatpush1.msra.mxu0 0.0
        %1240 = vmatprep.subr.mxu0 0.0
        %1241 = vmatpush1.msra.mxu0 0.0
        %1242 = vmatprep.subr.mxu0 0.0
        %1243 = vmatpush1.msra.mxu0 0.0
        %1244 = vmatprep.subr.mxu0 0.0
        %1245 = vmatpush1.msra.mxu0 0.0
        %1246 = vmatprep.subr.mxu0 0.0
        %1247 = vmatpush1.msra.mxu0 0.0
        %1248 = vmatprep.subr.mxu0 0.0
        %1249 = vmatpush1.msra.mxu0 0.0
        %1250 = vmatprep.subr.mxu0 0.0
        %1251 = vmatpush1.msra.mxu0 0.0
        %1252 = vmatprep.subr.mxu0 0.0
        %1253 = vmatpush1.msra.mxu0 0.0
        %1254 = vmatprep.subr.mxu0 0.0
        %1255 = vmatpush1.msra.mxu0 0.0
        %1256 = vmatprep.subr.mxu0 0.0
        %1257 = vmatpush1.msra.mxu0 0.0
        %1258 = vmatprep.subr.mxu0 0.0
        %1259 = vmatpush1.msra.mxu0 0.0
        %1260 = vmatprep.subr.mxu0 0.0
        %1261 = vmatpush1.msra.mxu0 0.0
        %1262 = vmatprep.subr.mxu0 0.0
        %1263 = vmatpush1.msra.mxu0 0.0
        %1264 = vmatprep.subr.mxu0 0.0
        %1265 = vmatpush1.msra.mxu0 0.0
        %1266 = vmatprep.subr.mxu0 0.0
        %1267 = vmatpush1.msra.mxu0 0.0
        %1268 = vmatprep.subr.mxu0 0.0
        %1269 = vmatpush1.msra.mxu0 0.0
        %1270 = vmatprep.subr.mxu0 0.0
        %1271 = vmatpush1.msra.mxu0 0.0
        %1272 = vmatprep.subr.mxu0 0.0
        %1273 = vmatpush1.msra.mxu0 0.0
        %1274 = vmatprep.mubr.f32.mxu0 0.0
        %v1275 = vand.u32 %v617, 4294901760
        %v1276 = vsub.f32 %v617, %v1275
        %1277 = vmatmul.mubr.f32.gmra.mrb[0].mxu0 %v1276
        %v1278 = vpop.f32.mrb[0].mxu0
        %v1279 = vadd.f32 %v1069, %v1278
        %v1280 = vpop.f32.mrb[0].mxu0
        %v1281 = vadd.f32 %v1071, %v1280
        %1282 = vmatprep.mubr.f32.mxu0 0.0
        %v1283 = vand.u32 %v620, 4294901760
        %v1284 = vsub.f32 %v620, %v1283
        %1285 = vmatmul.mubr.f32.gmra.mrb[0].mxu0 %v1284
        %v1286 = vpop.f32.mrb[0].mxu0
        %v1287 = vadd.f32 %v1076, %v1286
        %v1288 = vpop.f32.mrb[0].mxu0
        %v1289 = vadd.f32 %v1078, %v1288
        %1290 = vmatprep.mubr.f32.mxu0 0.0
        %v1291 = vand.u32 %v623, 4294901760
        %v1292 = vsub.f32 %v623, %v1291
        %1293 = vmatmul.mubr.f32.gmra.mrb[0].mxu0 %v1292
        %v1294 = vpop.f32.mrb[0].mxu0
        %v1295 = vadd.f32 %v1083, %v1294
        %v1296 = vpop.f32.mrb[0].mxu0
        %v1297 = vadd.f32 %v1085, %v1296
        %1298 = vmatprep.mubr.f32.mxu0 0.0
        %v1299 = vand.u32 %v626, 4294901760
        %v1300 = vsub.f32 %v626, %v1299
        %1301 = vmatmul.mubr.f32.gmra.mrb[0].mxu0 %v1300
        %v1302 = vpop.f32.mrb[0].mxu0
        %v1303 = vadd.f32 %v1090, %v1302
        %v1304 = vpop.f32.mrb[0].mxu0
        %v1305 = vadd.f32 %v1092, %v1304
        %1306 = vmatprep.mubr.f32.mxu0 0.0
        %v1307 = vand.u32 %v629, 4294901760
        %v1308 = vsub.f32 %v629, %v1307
        %1309 = vmatmul.mubr.f32.gmra.mrb[0].mxu0 %v1308
        %v1310 = vpop.f32.mrb[0].mxu0
        %v1311 = vadd.f32 %v1097, %v1310
        %v1312 = vpop.f32.mrb[0].mxu0
        %v1313 = vadd.f32 %v1099, %v1312
        %1314 = vmatprep.mubr.f32.mxu0 0.0
        %v1315 = vand.u32 %v632, 4294901760
        %v1316 = vsub.f32 %v632, %v1315
        %1317 = vmatmul.mubr.f32.gmra.mrb[0].mxu0 %v1316
        %v1318 = vpop.f32.mrb[0].mxu0
        %v1319 = vadd.f32 %v1104, %v1318
        %v1320 = vpop.f32.mrb[0].mxu0
        %v1321 = vadd.f32 %v1106, %v1320
        %1322 = vmatprep.mubr.f32.mxu0 0.0
        %v1323 = vand.u32 %v635, 4294901760
        %v1324 = vsub.f32 %v635, %v1323
        %1325 = vmatmul.mubr.f32.gmra.mrb[0].mxu0 %v1324
        %v1326 = vpop.f32.mrb[0].mxu0
        %v1327 = vadd.f32 %v1111, %v1326
        %v1328 = vpop.f32.mrb[0].mxu0
        %v1329 = vadd.f32 %v1113, %v1328
        %1330 = vmatprep.mubr.f32.mxu0 0.0
        %v1331 = vand.u32 %v638, 4294901760
        %v1332 = vsub.f32 %v638, %v1331
        %1333 = vmatmul.mubr.f32.gmra.mrb[0].mxu0 %v1332
        %v1334 = vpop.f32.mrb[0].mxu0
        %v1335 = vadd.f32 %v1118, %v1334
        %v1336 = vpop.f32.mrb[0].mxu0
        %v1337 = vadd.f32 %v1120, %v1336
        %1338 = vmatprep.mubr.f32.mxu0 0.0
        %v1339 = vand.u32 %v641, 4294901760
        %v1340 = vsub.f32 %v641, %v1339
        %1341 = vmatmul.mubr.f32.gmra.mrb[0].mxu0 %v1340
        %v1342 = vpop.f32.mrb[0].mxu0
        %v1343 = vadd.f32 %v1125, %v1342
        %v1344 = vpop.f32.mrb[0].mxu0
        %v1345 = vadd.f32 %v1127, %v1344
        %1346 = vmatprep.mubr.f32.mxu0 0.0
        %v1347 = vand.u32 %v644, 4294901760
        %v1348 = vsub.f32 %v644, %v1347
        %1349 = vmatmul.mubr.f32.gmra.mrb[0].mxu0 %v1348
        %v1350 = vpop.f32.mrb[0].mxu0
        %v1351 = vadd.f32 %v1132, %v1350
        %v1352 = vpop.f32.mrb[0].mxu0
        %v1353 = vadd.f32 %v1134, %v1352
        %1354 = vmatprep.mubr.f32.mxu0 0.0
        %v1355 = vand.u32 %v647, 4294901760
        %v1356 = vsub.f32 %v647, %v1355
        %1357 = vmatmul.mubr.f32.gmra.mrb[0].mxu0 %v1356
        %v1358 = vpop.f32.mrb[0].mxu0
        %v1359 = vadd.f32 %v1139, %v1358
        %v1360 = vpop.f32.mrb[0].mxu0
        %v1361 = vadd.f32 %v1141, %v1360
        %1362 = vmatprep.mubr.f32.mxu0 0.0
        %v1363 = vand.u32 %v650, 4294901760
        %v1364 = vsub.f32 %v650, %v1363
        %1365 = vmatmul.mubr.f32.gmra.mrb[0].mxu0 %v1364
        %v1366 = vpop.f32.mrb[0].mxu0
        %v1367 = vadd.f32 %v1146, %v1366
        %v1368 = vpop.f32.mrb[0].mxu0
        %v1369 = vadd.f32 %v1148, %v1368
        %1370 = vmatprep.mubr.f32.mxu0 0.0
        %v1371 = vand.u32 %v653, 4294901760
        %v1372 = vsub.f32 %v653, %v1371
        %1373 = vmatmul.mubr.f32.gmra.mrb[0].mxu0 %v1372
        %v1374 = vpop.f32.mrb[0].mxu0
        %v1375 = vadd.f32 %v1153, %v1374
        %v1376 = vpop.f32.mrb[0].mxu0
        %v1377 = vadd.f32 %v1155, %v1376
        %1378 = vmatprep.mubr.f32.mxu0 0.0
        %v1379 = vand.u32 %v656, 4294901760
        %v1380 = vsub.f32 %v656, %v1379
        %1381 = vmatmul.mubr.f32.gmra.mrb[0].mxu0 %v1380
        %v1382 = vpop.f32.mrb[0].mxu0
        %v1383 = vadd.f32 %v1160, %v1382
        %v1384 = vpop.f32.mrb[0].mxu0
        %v1385 = vadd.f32 %v1162, %v1384
        %1386 = vmatprep.mubr.f32.mxu0 0.0
        %v1387 = vand.u32 %v659, 4294901760
        %v1388 = vsub.f32 %v659, %v1387
        %1389 = vmatmul.mubr.f32.gmra.mrb[0].mxu0 %v1388
        %v1390 = vpop.f32.mrb[0].mxu0
        %v1391 = vadd.f32 %v1167, %v1390
        %v1392 = vpop.f32.mrb[0].mxu0
        %v1393 = vadd.f32 %v1169, %v1392
        %1394 = vmatprep.mubr.f32.mxu0 0.0
        %v1395 = vand.u32 %v662, 4294901760
        %v1396 = vsub.f32 %v662, %v1395
        %1397 = vmatmul.mubr.f32.gmra.mrb[0].mxu0 %v1396
        %v1398 = vpop.f32.mrb[0].mxu0
        %v1399 = vadd.f32 %v1174, %v1398
        %v1400 = vpop.f32.mrb[0].mxu0
        %v1401 = vadd.f32 %v1176, %v1400
        %1402 = vdwg.mxu0
        %v1403 = vand.u32 %v343, 4294901760
        %1404 = vmatprep.subr.mxu0 %v1403
        %v1405 = vand.u32 %v342, 4294901760
        %1406 = vmatpush1.msra.mxu0 %v1405
        %v1407 = vand.u32 %v345, 4294901760
        %1408 = vmatprep.subr.mxu0 %v1407
        %v1409 = vand.u32 %v344, 4294901760
        %1410 = vmatpush1.msra.mxu0 %v1409
        %v1411 = vand.u32 %v347, 4294901760
        %1412 = vmatprep.subr.mxu0 %v1411
        %v1413 = vand.u32 %v346, 4294901760
        %1414 = vmatpush1.msra.mxu0 %v1413
        %v1415 = vand.u32 %v349, 4294901760
        %1416 = vmatprep.subr.mxu0 %v1415
        %v1417 = vand.u32 %v348, 4294901760
        %1418 = vmatpush1.msra.mxu0 %v1417
        %v1419 = vand.u32 %v351, 4294901760
        %1420 = vmatprep.subr.mxu0 %v1419
        %v1421 = vand.u32 %v350, 4294901760
        %1422 = vmatpush1.msra.mxu0 %v1421
        %v1423 = vand.u32 %v353, 4294901760
        %1424 = vmatprep.subr.mxu0 %v1423
        %v1425 = vand.u32 %v352, 4294901760
        %1426 = vmatpush1.msra.mxu0 %v1425
        %v1427 = vand.u32 %v355, 4294901760
        %1428 = vmatprep.subr.mxu0 %v1427
        %v1429 = vand.u32 %v354, 4294901760
        %1430 = vmatpush1.msra.mxu0 %v1429
        %v1431 = vand.u32 %v357, 4294901760
        %1432 = vmatprep.subr.mxu0 %v1431
        %v1433 = vand.u32 %v356, 4294901760
        %1434 = vmatpush1.msra.mxu0 %v1433
        %1435 = vmatprep.subr.mxu0 0.0
        %1436 = vmatpush1.msra.mxu0 0.0
        %1437 = vmatprep.subr.mxu0 0.0
        %1438 = vmatpush1.msra.mxu0 0.0
        %1439 = vmatprep.subr.mxu0 0.0
        %1440 = vmatpush1.msra.mxu0 0.0
        %1441 = vmatprep.subr.mxu0 0.0
        %1442 = vmatpush1.msra.mxu0 0.0
        %1443 = vmatprep.subr.mxu0 0.0
        %1444 = vmatpush1.msra.mxu0 0.0
        %1445 = vmatprep.subr.mxu0 0.0
        %1446 = vmatpush1.msra.mxu0 0.0
        %1447 = vmatprep.subr.mxu0 0.0
        %1448 = vmatpush1.msra.mxu0 0.0
        %1449 = vmatprep.subr.mxu0 0.0
        %1450 = vmatpush1.msra.mxu0 0.0
        %1451 = vmatprep.subr.mxu0 0.0
        %1452 = vmatpush1.msra.mxu0 0.0
        %1453 = vmatprep.subr.mxu0 0.0
        %1454 = vmatpush1.msra.mxu0 0.0
        %1455 = vmatprep.subr.mxu0 0.0
        %1456 = vmatpush1.msra.mxu0 0.0
        %1457 = vmatprep.subr.mxu0 0.0
        %1458 = vmatpush1.msra.mxu0 0.0
        %1459 = vmatprep.subr.mxu0 0.0
        %1460 = vmatpush1.msra.mxu0 0.0
        %1461 = vmatprep.subr.mxu0 0.0
        %1462 = vmatpush1.msra.mxu0 0.0
        %1463 = vmatprep.subr.mxu0 0.0
        %1464 = vmatpush1.msra.mxu0 0.0
        %1465 = vmatprep.subr.mxu0 0.0
        %1466 = vmatpush1.msra.mxu0 0.0
        %1467 = vmatprep.subr.mxu0 0.0
        %1468 = vmatpush1.msra.mxu0 0.0
        %1469 = vmatprep.subr.mxu0 0.0
        %1470 = vmatpush1.msra.mxu0 0.0
        %1471 = vmatprep.subr.mxu0 0.0
        %1472 = vmatpush1.msra.mxu0 0.0
        %1473 = vmatprep.subr.mxu0 0.0
        %1474 = vmatpush1.msra.mxu0 0.0
        %1475 = vmatprep.subr.mxu0 0.0
        %1476 = vmatpush1.msra.mxu0 0.0
        %1477 = vmatprep.subr.mxu0 0.0
        %1478 = vmatpush1.msra.mxu0 0.0
        %1479 = vmatprep.subr.mxu0 0.0
        %1480 = vmatpush1.msra.mxu0 0.0
        %1481 = vmatprep.subr.mxu0 0.0
        %1482 = vmatpush1.msra.mxu0 0.0
        %1483 = vmatprep.mubr.f32.mxu0 0.0
        %v1484 = vand.u32 %v617, 4294901760
        %v1485 = vsub.f32 %v617, %v1484
        %v1486 = vand.u32 %v1485, 4294901760
        %1487 = vmatmul.mubr.f32.gmra.mrb[0].mxu0 %v1486
        %v1488 = vpop.f32.mrb[0].mxu0
        %v1489 = vadd.f32 %v1279, %v1488
        %v1490 = vpop.f32.mrb[0].mxu0
        %v1491 = vadd.f32 %v1281, %v1490
        %1492 = vmatprep.mubr.f32.mxu0 0.0
        %v1493 = vand.u32 %v620, 4294901760
        %v1494 = vsub.f32 %v620, %v1493
        %v1495 = vand.u32 %v1494, 4294901760
        %1496 = vmatmul.mubr.f32.gmra.mrb[0].mxu0 %v1495
        %v1497 = vpop.f32.mrb[0].mxu0
        %v1498 = vadd.f32 %v1287, %v1497
        %v1499 = vpop.f32.mrb[0].mxu0
        %v1500 = vadd.f32 %v1289, %v1499
        %1501 = vmatprep.mubr.f32.mxu0 0.0
        %v1502 = vand.u32 %v623, 4294901760
        %v1503 = vsub.f32 %v623, %v1502
        %v1504 = vand.u32 %v1503, 4294901760
        %1505 = vmatmul.mubr.f32.gmra.mrb[0].mxu0 %v1504
        %v1506 = vpop.f32.mrb[0].mxu0
        %v1507 = vadd.f32 %v1295, %v1506
        %v1508 = vpop.f32.mrb[0].mxu0
        %v1509 = vadd.f32 %v1297, %v1508
        %1510 = vmatprep.mubr.f32.mxu0 0.0
        %v1511 = vand.u32 %v626, 4294901760
        %v1512 = vsub.f32 %v626, %v1511
        %v1513 = vand.u32 %v1512, 4294901760
        %1514 = vmatmul.mubr.f32.gmra.mrb[0].mxu0 %v1513
        %v1515 = vpop.f32.mrb[0].mxu0
        %v1516 = vadd.f32 %v1303, %v1515
        %v1517 = vpop.f32.mrb[0].mxu0
        %v1518 = vadd.f32 %v1305, %v1517
        %1519 = vmatprep.mubr.f32.mxu0 0.0
        %v1520 = vand.u32 %v629, 4294901760
        %v1521 = vsub.f32 %v629, %v1520
        %v1522 = vand.u32 %v1521, 4294901760
        %1523 = vmatmul.mubr.f32.gmra.mrb[0].mxu0 %v1522
        %v1524 = vpop.f32.mrb[0].mxu0
        %v1525 = vadd.f32 %v1311, %v1524
        %v1526 = vpop.f32.mrb[0].mxu0
        %v1527 = vadd.f32 %v1313, %v1526
        %1528 = vmatprep.mubr.f32.mxu0 0.0
        %v1529 = vand.u32 %v632, 4294901760
        %v1530 = vsub.f32 %v632, %v1529
        %v1531 = vand.u32 %v1530, 4294901760
        %1532 = vmatmul.mubr.f32.gmra.mrb[0].mxu0 %v1531
        %v1533 = vpop.f32.mrb[0].mxu0
        %v1534 = vadd.f32 %v1319, %v1533
        %v1535 = vpop.f32.mrb[0].mxu0
        %v1536 = vadd.f32 %v1321, %v1535
        %1537 = vmatprep.mubr.f32.mxu0 0.0
        %v1538 = vand.u32 %v635, 4294901760
        %v1539 = vsub.f32 %v635, %v1538
        %v1540 = vand.u32 %v1539, 4294901760
        %1541 = vmatmul.mubr.f32.gmra.mrb[0].mxu0 %v1540
        %v1542 = vpop.f32.mrb[0].mxu0
        %v1543 = vadd.f32 %v1327, %v1542
        %v1544 = vpop.f32.mrb[0].mxu0
        %v1545 = vadd.f32 %v1329, %v1544
        %1546 = vmatprep.mubr.f32.mxu0 0.0
        %v1547 = vand.u32 %v638, 4294901760
        %v1548 = vsub.f32 %v638, %v1547
        %v1549 = vand.u32 %v1548, 4294901760
        %1550 = vmatmul.mubr.f32.gmra.mrb[0].mxu0 %v1549
        %v1551 = vpop.f32.mrb[0].mxu0
        %v1552 = vadd.f32 %v1335, %v1551
        %v1553 = vpop.f32.mrb[0].mxu0
        %v1554 = vadd.f32 %v1337, %v1553
        %1555 = vmatprep.mubr.f32.mxu0 0.0
        %v1556 = vand.u32 %v641, 4294901760
        %v1557 = vsub.f32 %v641, %v1556
        %v1558 = vand.u32 %v1557, 4294901760
        %1559 = vmatmul.mubr.f32.gmra.mrb[0].mxu0 %v1558
        %v1560 = vpop.f32.mrb[0].mxu0
        %v1561 = vadd.f32 %v1343, %v1560
        %v1562 = vpop.f32.mrb[0].mxu0
        %v1563 = vadd.f32 %v1345, %v1562
        %1564 = vmatprep.mubr.f32.mxu0 0.0
        %v1565 = vand.u32 %v644, 4294901760
        %v1566 = vsub.f32 %v644, %v1565
        %v1567 = vand.u32 %v1566, 4294901760
        %1568 = vmatmul.mubr.f32.gmra.mrb[0].mxu0 %v1567
        %v1569 = vpop.f32.mrb[0].mxu0
        %v1570 = vadd.f32 %v1351, %v1569
        %v1571 = vpop.f32.mrb[0].mxu0
        %v1572 = vadd.f32 %v1353, %v1571
        %1573 = vmatprep.mubr.f32.mxu0 0.0
        %v1574 = vand.u32 %v647, 4294901760
        %v1575 = vsub.f32 %v647, %v1574
        %v1576 = vand.u32 %v1575, 4294901760
        %1577 = vmatmul.mubr.f32.gmra.mrb[0].mxu0 %v1576
        %v1578 = vpop.f32.mrb[0].mxu0
        %v1579 = vadd.f32 %v1359, %v1578
        %v1580 = vpop.f32.mrb[0].mxu0
        %v1581 = vadd.f32 %v1361, %v1580
        %1582 = vmatprep.mubr.f32.mxu0 0.0
        %v1583 = vand.u32 %v650, 4294901760
        %v1584 = vsub.f32 %v650, %v1583
        %v1585 = vand.u32 %v1584, 4294901760
        %1586 = vmatmul.mubr.f32.gmra.mrb[0].mxu0 %v1585
        %v1587 = vpop.f32.mrb[0].mxu0
        %v1588 = vadd.f32 %v1367, %v1587
        %v1589 = vpop.f32.mrb[0].mxu0
        %v1590 = vadd.f32 %v1369, %v1589
        %1591 = vmatprep.mubr.f32.mxu0 0.0
        %v1592 = vand.u32 %v653, 4294901760
        %v1593 = vsub.f32 %v653, %v1592
        %v1594 = vand.u32 %v1593, 4294901760
        %1595 = vmatmul.mubr.f32.gmra.mrb[0].mxu0 %v1594
        %v1596 = vpop.f32.mrb[0].mxu0
        %v1597 = vadd.f32 %v1375, %v1596
        %v1598 = vpop.f32.mrb[0].mxu0
        %v1599 = vadd.f32 %v1377, %v1598
        %1600 = vmatprep.mubr.f32.mxu0 0.0
        %v1601 = vand.u32 %v656, 4294901760
        %v1602 = vsub.f32 %v656, %v1601
        %v1603 = vand.u32 %v1602, 4294901760
        %1604 = vmatmul.mubr.f32.gmra.mrb[0].mxu0 %v1603
        %v1605 = vpop.f32.mrb[0].mxu0
        %v1606 = vadd.f32 %v1383, %v1605
        %v1607 = vpop.f32.mrb[0].mxu0
        %v1608 = vadd.f32 %v1385, %v1607
        %1609 = vmatprep.mubr.f32.mxu0 0.0
        %v1610 = vand.u32 %v659, 4294901760
        %v1611 = vsub.f32 %v659, %v1610
        %v1612 = vand.u32 %v1611, 4294901760
        %1613 = vmatmul.mubr.f32.gmra.mrb[0].mxu0 %v1612
        %v1614 = vpop.f32.mrb[0].mxu0
        %v1615 = vadd.f32 %v1391, %v1614
        %v1616 = vpop.f32.mrb[0].mxu0
        %v1617 = vadd.f32 %v1393, %v1616
        %1618 = vmatprep.mubr.f32.mxu0 0.0
        %v1619 = vand.u32 %v662, 4294901760
        %v1620 = vsub.f32 %v662, %v1619
        %v1621 = vand.u32 %v1620, 4294901760
        %1622 = vmatmul.mubr.f32.gmra.mrb[0].mxu0 %v1621
        %v1623 = vpop.f32.mrb[0].mxu0
        %v1624 = vadd.f32 %v1399, %v1623
        %v1625 = vpop.f32.mrb[0].mxu0
        %v1626 = vadd.f32 %v1401, %v1625
        %1627 = vdwg.mxu0
        %v1628 = vand.u32 %v343, 4294901760
        %v1629 = vsub.f32 %v343, %v1628
        %v1630 = vand.u32 %v1629, 4294901760
        %1631 = vmatprep.subr.mxu0 %v1630
        %v1632 = vand.u32 %v342, 4294901760
        %v1633 = vsub.f32 %v342, %v1632
        %v1634 = vand.u32 %v1633, 4294901760
        %1635 = vmatpush1.msra.mxu0 %v1634
        %v1636 = vand.u32 %v345, 4294901760
        %v1637 = vsub.f32 %v345, %v1636
        %v1638 = vand.u32 %v1637, 4294901760
        %1639 = vmatprep.subr.mxu0 %v1638
        %v1640 = vand.u32 %v344, 4294901760
        %v1641 = vsub.f32 %v344, %v1640
        %v1642 = vand.u32 %v1641, 4294901760
        %1643 = vmatpush1.msra.mxu0 %v1642
        %v1644 = vand.u32 %v347, 4294901760
        %v1645 = vsub.f32 %v347, %v1644
        %v1646 = vand.u32 %v1645, 4294901760
        %1647 = vmatprep.subr.mxu0 %v1646
        %v1648 = vand.u32 %v346, 4294901760
        %v1649 = vsub.f32 %v346, %v1648
        %v1650 = vand.u32 %v1649, 4294901760
        %1651 = vmatpush1.msra.mxu0 %v1650
        %v1652 = vand.u32 %v349, 4294901760
        %v1653 = vsub.f32 %v349, %v1652
        %v1654 = vand.u32 %v1653, 4294901760
        %1655 = vmatprep.subr.mxu0 %v1654
        %v1656 = vand.u32 %v348, 4294901760
        %v1657 = vsub.f32 %v348, %v1656
        %v1658 = vand.u32 %v1657, 4294901760
        %1659 = vmatpush1.msra.mxu0 %v1658
        %v1660 = vand.u32 %v351, 4294901760
        %v1661 = vsub.f32 %v351, %v1660
        %v1662 = vand.u32 %v1661, 4294901760
        %1663 = vmatprep.subr.mxu0 %v1662
        %v1664 = vand.u32 %v350, 4294901760
        %v1665 = vsub.f32 %v350, %v1664
        %v1666 = vand.u32 %v1665, 4294901760
        %1667 = vmatpush1.msra.mxu0 %v1666
        %v1668 = vand.u32 %v353, 4294901760
        %v1669 = vsub.f32 %v353, %v1668
        %v1670 = vand.u32 %v1669, 4294901760
        %1671 = vmatprep.subr.mxu0 %v1670
        %v1672 = vand.u32 %v352, 4294901760
        %v1673 = vsub.f32 %v352, %v1672
        %v1674 = vand.u32 %v1673, 4294901760
        %1675 = vmatpush1.msra.mxu0 %v1674
        %v1676 = vand.u32 %v355, 4294901760
        %v1677 = vsub.f32 %v355, %v1676
        %v1678 = vand.u32 %v1677, 4294901760
        %1679 = vmatprep.subr.mxu0 %v1678
        %v1680 = vand.u32 %v354, 4294901760
        %v1681 = vsub.f32 %v354, %v1680
        %v1682 = vand.u32 %v1681, 4294901760
        %1683 = vmatpush1.msra.mxu0 %v1682
        %v1684 = vand.u32 %v357, 4294901760
        %v1685 = vsub.f32 %v357, %v1684
        %v1686 = vand.u32 %v1685, 4294901760
        %1687 = vmatprep.subr.mxu0 %v1686
        %v1688 = vand.u32 %v356, 4294901760
        %v1689 = vsub.f32 %v356, %v1688
        %v1690 = vand.u32 %v1689, 4294901760
        %1691 = vmatpush1.msra.mxu0 %v1690
        %1692 = vmatprep.subr.mxu0 0.0
        %1693 = vmatpush1.msra.mxu0 0.0
        %1694 = vmatprep.subr.mxu0 0.0
        %1695 = vmatpush1.msra.mxu0 0.0
        %1696 = vmatprep.subr.mxu0 0.0
        %1697 = vmatpush1.msra.mxu0 0.0
        %1698 = vmatprep.subr.mxu0 0.0
        %1699 = vmatpush1.msra.mxu0 0.0
        %1700 = vmatprep.subr.mxu0 0.0
        %1701 = vmatpush1.msra.mxu0 0.0
        %1702 = vmatprep.subr.mxu0 0.0
        %1703 = vmatpush1.msra.mxu0 0.0
        %1704 = vmatprep.subr.mxu0 0.0
        %1705 = vmatpush1.msra.mxu0 0.0
        %1706 = vmatprep.subr.mxu0 0.0
        %1707 = vmatpush1.msra.mxu0 0.0
        %1708 = vmatprep.subr.mxu0 0.0
        %1709 = vmatpush1.msra.mxu0 0.0
        %1710 = vmatprep.subr.mxu0 0.0
        %1711 = vmatpush1.msra.mxu0 0.0
        %1712 = vmatprep.subr.mxu0 0.0
        %1713 = vmatpush1.msra.mxu0 0.0
        %1714 = vmatprep.subr.mxu0 0.0
        %1715 = vmatpush1.msra.mxu0 0.0
        %1716 = vmatprep.subr.mxu0 0.0
        %1717 = vmatpush1.msra.mxu0 0.0
        %1718 = vmatprep.subr.mxu0 0.0
        %1719 = vmatpush1.msra.mxu0 0.0
        %1720 = vmatprep.subr.mxu0 0.0
        %1721 = vmatpush1.msra.mxu0 0.0
        %1722 = vmatprep.subr.mxu0 0.0
        %1723 = vmatpush1.msra.mxu0 0.0
        %1724 = vmatprep.subr.mxu0 0.0
        %1725 = vmatpush1.msra.mxu0 0.0
        %1726 = vmatprep.subr.mxu0 0.0
        %1727 = vmatpush1.msra.mxu0 0.0
        %1728 = vmatprep.subr.mxu0 0.0
        %1729 = vmatpush1.msra.mxu0 0.0
        %1730 = vmatprep.subr.mxu0 0.0
        %1731 = vmatpush1.msra.mxu0 0.0
        %1732 = vmatprep.subr.mxu0 0.0
        %1733 = vmatpush1.msra.mxu0 0.0
        %1734 = vmatprep.subr.mxu0 0.0
        %1735 = vmatpush1.msra.mxu0 0.0
        %1736 = vmatprep.subr.mxu0 0.0
        %1737 = vmatpush1.msra.mxu0 0.0
        %1738 = vmatprep.subr.mxu0 0.0
        %1739 = vmatpush1.msra.mxu0 0.0
        %1740 = vmatprep.mubr.f32.mxu0 0.0
        %v1741 = vand.u32 %v617, 4294901760
        %1742 = vmatmul.mubr.f32.gmra.mrb[0].mxu0 %v1741
        %v1743 = vpop.f32.mrb[0].mxu0
        %v1744 = vadd.f32 %v1489, %v1743
        %v1745 = vpop.f32.mrb[0].mxu0
        %v1746 = vadd.f32 %v1491, %v1745
        %1747 = vmatprep.mubr.f32.mxu0 0.0
        %v1748 = vand.u32 %v620, 4294901760
        %1749 = vmatmul.mubr.f32.gmra.mrb[0].mxu0 %v1748
        %v1750 = vpop.f32.mrb[0].mxu0
        %v1751 = vadd.f32 %v1498, %v1750
        %v1752 = vpop.f32.mrb[0].mxu0
        %v1753 = vadd.f32 %v1500, %v1752
        %1754 = vmatprep.mubr.f32.mxu0 0.0
        %v1755 = vand.u32 %v623, 4294901760
        %1756 = vmatmul.mubr.f32.gmra.mrb[0].mxu0 %v1755
        %v1757 = vpop.f32.mrb[0].mxu0
        %v1758 = vadd.f32 %v1507, %v1757
        %v1759 = vpop.f32.mrb[0].mxu0
        %v1760 = vadd.f32 %v1509, %v1759
        %1761 = vmatprep.mubr.f32.mxu0 0.0
        %v1762 = vand.u32 %v626, 4294901760
        %1763 = vmatmul.mubr.f32.gmra.mrb[0].mxu0 %v1762
        %v1764 = vpop.f32.mrb[0].mxu0
        %v1765 = vadd.f32 %v1516, %v1764
        %v1766 = vpop.f32.mrb[0].mxu0
        %v1767 = vadd.f32 %v1518, %v1766
        %1768 = vmatprep.mubr.f32.mxu0 0.0
        %v1769 = vand.u32 %v629, 4294901760
        %1770 = vmatmul.mubr.f32.gmra.mrb[0].mxu0 %v1769
        %v1771 = vpop.f32.mrb[0].mxu0
        %v1772 = vadd.f32 %v1525, %v1771
        %v1773 = vpop.f32.mrb[0].mxu0
        %v1774 = vadd.f32 %v1527, %v1773
        %1775 = vmatprep.mubr.f32.mxu0 0.0
        %v1776 = vand.u32 %v632, 4294901760
        %1777 = vmatmul.mubr.f32.gmra.mrb[0].mxu0 %v1776
        %v1778 = vpop.f32.mrb[0].mxu0
        %v1779 = vadd.f32 %v1534, %v1778
        %v1780 = vpop.f32.mrb[0].mxu0
        %v1781 = vadd.f32 %v1536, %v1780
        %1782 = vmatprep.mubr.f32.mxu0 0.0
        %v1783 = vand.u32 %v635, 4294901760
        %1784 = vmatmul.mubr.f32.gmra.mrb[0].mxu0 %v1783
        %v1785 = vpop.f32.mrb[0].mxu0
        %v1786 = vadd.f32 %v1543, %v1785
        %v1787 = vpop.f32.mrb[0].mxu0
        %v1788 = vadd.f32 %v1545, %v1787
        %1789 = vmatprep.mubr.f32.mxu0 0.0
        %v1790 = vand.u32 %v638, 4294901760
        %1791 = vmatmul.mubr.f32.gmra.mrb[0].mxu0 %v1790
        %v1792 = vpop.f32.mrb[0].mxu0
        %v1793 = vadd.f32 %v1552, %v1792
        %v1794 = vpop.f32.mrb[0].mxu0
        %v1795 = vadd.f32 %v1554, %v1794
        %1796 = vmatprep.mubr.f32.mxu0 0.0
        %v1797 = vand.u32 %v641, 4294901760
        %1798 = vmatmul.mubr.f32.gmra.mrb[0].mxu0 %v1797
        %v1799 = vpop.f32.mrb[0].mxu0
        %v1800 = vadd.f32 %v1561, %v1799
        %v1801 = vpop.f32.mrb[0].mxu0
        %v1802 = vadd.f32 %v1563, %v1801
        %1803 = vmatprep.mubr.f32.mxu0 0.0
        %v1804 = vand.u32 %v644, 4294901760
        %1805 = vmatmul.mubr.f32.gmra.mrb[0].mxu0 %v1804
        %v1806 = vpop.f32.mrb[0].mxu0
        %v1807 = vadd.f32 %v1570, %v1806
        %v1808 = vpop.f32.mrb[0].mxu0
        %v1809 = vadd.f32 %v1572, %v1808
        %1810 = vmatprep.mubr.f32.mxu0 0.0
        %v1811 = vand.u32 %v647, 4294901760
        %1812 = vmatmul.mubr.f32.gmra.mrb[0].mxu0 %v1811
        %v1813 = vpop.f32.mrb[0].mxu0
        %v1814 = vadd.f32 %v1579, %v1813
        %v1815 = vpop.f32.mrb[0].mxu0
        %v1816 = vadd.f32 %v1581, %v1815
        %1817 = vmatprep.mubr.f32.mxu0 0.0
        %v1818 = vand.u32 %v650, 4294901760
        %1819 = vmatmul.mubr.f32.gmra.mrb[0].mxu0 %v1818
        %v1820 = vpop.f32.mrb[0].mxu0
        %v1821 = vadd.f32 %v1588, %v1820
        %v1822 = vpop.f32.mrb[0].mxu0
        %v1823 = vadd.f32 %v1590, %v1822
        %1824 = vmatprep.mubr.f32.mxu0 0.0
        %v1825 = vand.u32 %v653, 4294901760
        %1826 = vmatmul.mubr.f32.gmra.mrb[0].mxu0 %v1825
        %v1827 = vpop.f32.mrb[0].mxu0
        %v1828 = vadd.f32 %v1597, %v1827
        %v1829 = vpop.f32.mrb[0].mxu0
        %v1830 = vadd.f32 %v1599, %v1829
        %1831 = vmatprep.mubr.f32.mxu0 0.0
        %v1832 = vand.u32 %v656, 4294901760
        %1833 = vmatmul.mubr.f32.gmra.mrb[0].mxu0 %v1832
        %v1834 = vpop.f32.mrb[0].mxu0
        %v1835 = vadd.f32 %v1606, %v1834
        %v1836 = vpop.f32.mrb[0].mxu0
        %v1837 = vadd.f32 %v1608, %v1836
        %1838 = vmatprep.mubr.f32.mxu0 0.0
        %v1839 = vand.u32 %v659, 4294901760
        %1840 = vmatmul.mubr.f32.gmra.mrb[0].mxu0 %v1839
        %v1841 = vpop.f32.mrb[0].mxu0
        %v1842 = vadd.f32 %v1615, %v1841
        %v1843 = vpop.f32.mrb[0].mxu0
        %v1844 = vadd.f32 %v1617, %v1843
        %1845 = vmatprep.mubr.f32.mxu0 0.0
        %v1846 = vand.u32 %v662, 4294901760
        %1847 = vmatmul.mubr.f32.gmra.mrb[0].mxu0 %v1846
        %v1848 = vpop.f32.mrb[0].mxu0
        %v1849 = vadd.f32 %v1624, %v1848
        %v1850 = vpop.f32.mrb[0].mxu0
        %v1851 = vadd.f32 %v1626, %v1850
        %1852 = vdwg.mxu0
        %v1853 = vand.u32 %v343, 4294901760
        %1854 = vmatprep.subr.mxu0 %v1853
        %v1855 = vand.u32 %v342, 4294901760
        %1856 = vmatpush1.msra.mxu0 %v1855
        %v1857 = vand.u32 %v345, 4294901760
        %1858 = vmatprep.subr.mxu0 %v1857
        %v1859 = vand.u32 %v344, 4294901760
        %1860 = vmatpush1.msra.mxu0 %v1859
        %v1861 = vand.u32 %v347, 4294901760
        %1862 = vmatprep.subr.mxu0 %v1861
        %v1863 = vand.u32 %v346, 4294901760
        %1864 = vmatpush1.msra.mxu0 %v1863
        %v1865 = vand.u32 %v349, 4294901760
        %1866 = vmatprep.subr.mxu0 %v1865
        %v1867 = vand.u32 %v348, 4294901760
        %1868 = vmatpush1.msra.mxu0 %v1867
        %v1869 = vand.u32 %v351, 4294901760
        %1870 = vmatprep.subr.mxu0 %v1869
        %v1871 = vand.u32 %v350, 4294901760
        %1872 = vmatpush1.msra.mxu0 %v1871
        %v1873 = vand.u32 %v353, 4294901760
        %1874 = vmatprep.subr.mxu0 %v1873
        %v1875 = vand.u32 %v352, 4294901760
        %1876 = vmatpush1.msra.mxu0 %v1875
        %v1877 = vand.u32 %v355, 4294901760
        %1878 = vmatprep.subr.mxu0 %v1877
        %v1879 = vand.u32 %v354, 4294901760
        %1880 = vmatpush1.msra.mxu0 %v1879
        %v1881 = vand.u32 %v357, 4294901760
        %1882 = vmatprep.subr.mxu0 %v1881
        %v1883 = vand.u32 %v356, 4294901760
        %1884 = vmatpush1.msra.mxu0 %v1883
        %1885 = vmatprep.subr.mxu0 0.0
        %1886 = vmatpush1.msra.mxu0 0.0
        %1887 = vmatprep.subr.mxu0 0.0
        %1888 = vmatpush1.msra.mxu0 0.0
        %1889 = vmatprep.subr.mxu0 0.0
        %1890 = vmatpush1.msra.mxu0 0.0
        %1891 = vmatprep.subr.mxu0 0.0
        %1892 = vmatpush1.msra.mxu0 0.0
        %1893 = vmatprep.subr.mxu0 0.0
        %1894 = vmatpush1.msra.mxu0 0.0
        %1895 = vmatprep.subr.mxu0 0.0
        %1896 = vmatpush1.msra.mxu0 0.0
        %1897 = vmatprep.subr.mxu0 0.0
        %1898 = vmatpush1.msra.mxu0 0.0
        %1899 = vmatprep.subr.mxu0 0.0
        %1900 = vmatpush1.msra.mxu0 0.0
        %1901 = vmatprep.subr.mxu0 0.0
        %1902 = vmatpush1.msra.mxu0 0.0
        %1903 = vmatprep.subr.mxu0 0.0
        %1904 = vmatpush1.msra.mxu0 0.0
        %1905 = vmatprep.subr.mxu0 0.0
        %1906 = vmatpush1.msra.mxu0 0.0
        %1907 = vmatprep.subr.mxu0 0.0
        %1908 = vmatpush1.msra.mxu0 0.0
        %1909 = vmatprep.subr.mxu0 0.0
        %1910 = vmatpush1.msra.mxu0 0.0
        %1911 = vmatprep.subr.mxu0 0.0
        %1912 = vmatpush1.msra.mxu0 0.0
        %1913 = vmatprep.subr.mxu0 0.0
        %1914 = vmatpush1.msra.mxu0 0.0
        %1915 = vmatprep.subr.mxu0 0.0
        %1916 = vmatpush1.msra.mxu0 0.0
        %1917 = vmatprep.subr.mxu0 0.0
        %1918 = vmatpush1.msra.mxu0 0.0
        %1919 = vmatprep.subr.mxu0 0.0
        %1920 = vmatpush1.msra.mxu0 0.0
        %1921 = vmatprep.subr.mxu0 0.0
        %1922 = vmatpush1.msra.mxu0 0.0
        %1923 = vmatprep.subr.mxu0 0.0
        %1924 = vmatpush1.msra.mxu0 0.0
        %1925 = vmatprep.subr.mxu0 0.0
        %1926 = vmatpush1.msra.mxu0 0.0
        %1927 = vmatprep.subr.mxu0 0.0
        %1928 = vmatpush1.msra.mxu0 0.0
        %1929 = vmatprep.subr.mxu0 0.0
        %1930 = vmatpush1.msra.mxu0 0.0
        %1931 = vmatprep.subr.mxu0 0.0
        %1932 = vmatpush1.msra.mxu0 0.0
        %1933 = vmatprep.mubr.f32.mxu0 0.0
        %v1934 = vand.u32 %v617, 4294901760
        %1935 = vmatmul.mubr.f32.gmra.mrb[0].mxu0 %v1934
        %v1936 = vpop.f32.mrb[0].mxu0
        %v1937 = vadd.f32 %v1744, %v1936
        %v1938 = vpop.f32.mrb[0].mxu0
        %v1939 = vadd.f32 %v1746, %v1938
        %1940 = vmatprep.mubr.f32.mxu0 0.0
        %v1941 = vand.u32 %v620, 4294901760
        %1942 = vmatmul.mubr.f32.gmra.mrb[0].mxu0 %v1941
        %v1943 = vpop.f32.mrb[0].mxu0
        %v1944 = vadd.f32 %v1751, %v1943
        %v1945 = vpop.f32.mrb[0].mxu0
        %v1946 = vadd.f32 %v1753, %v1945
        %1947 = vmatprep.mubr.f32.mxu0 0.0
        %v1948 = vand.u32 %v623, 4294901760
        %1949 = vmatmul.mubr.f32.gmra.mrb[0].mxu0 %v1948
        %v1950 = vpop.f32.mrb[0].mxu0
        %v1951 = vadd.f32 %v1758, %v1950
        %v1952 = vpop.f32.mrb[0].mxu0
        %v1953 = vadd.f32 %v1760, %v1952
        %1954 = vmatprep.mubr.f32.mxu0 0.0
        %v1955 = vand.u32 %v626, 4294901760
        %1956 = vmatmul.mubr.f32.gmra.mrb[0].mxu0 %v1955
        %v1957 = vpop.f32.mrb[0].mxu0
        %v1958 = vadd.f32 %v1765, %v1957
        %v1959 = vpop.f32.mrb[0].mxu0
        %v1960 = vadd.f32 %v1767, %v1959
        %1961 = vmatprep.mubr.f32.mxu0 0.0
        %v1962 = vand.u32 %v629, 4294901760
        %1963 = vmatmul.mubr.f32.gmra.mrb[0].mxu0 %v1962
        %v1964 = vpop.f32.mrb[0].mxu0
        %v1965 = vadd.f32 %v1772, %v1964
        %v1966 = vpop.f32.mrb[0].mxu0
        %v1967 = vadd.f32 %v1774, %v1966
        %1968 = vmatprep.mubr.f32.mxu0 0.0
        %v1969 = vand.u32 %v632, 4294901760
        %1970 = vmatmul.mubr.f32.gmra.mrb[0].mxu0 %v1969
        %v1971 = vpop.f32.mrb[0].mxu0
        %v1972 = vadd.f32 %v1779, %v1971
        %v1973 = vpop.f32.mrb[0].mxu0
        %v1974 = vadd.f32 %v1781, %v1973
        %1975 = vmatprep.mubr.f32.mxu0 0.0
        %v1976 = vand.u32 %v635, 4294901760
        %1977 = vmatmul.mubr.f32.gmra.mrb[0].mxu0 %v1976
        %v1978 = vpop.f32.mrb[0].mxu0
        %v1979 = vadd.f32 %v1786, %v1978
        %v1980 = vpop.f32.mrb[0].mxu0
        %v1981 = vadd.f32 %v1788, %v1980
        %1982 = vmatprep.mubr.f32.mxu0 0.0
        %v1983 = vand.u32 %v638, 4294901760
        %1984 = vmatmul.mubr.f32.gmra.mrb[0].mxu0 %v1983
        %v1985 = vpop.f32.mrb[0].mxu0
        %v1986 = vadd.f32 %v1793, %v1985
        %v1987 = vpop.f32.mrb[0].mxu0
        %v1988 = vadd.f32 %v1795, %v1987
        %1989 = vmatprep.mubr.f32.mxu0 0.0
        %v1990 = vand.u32 %v641, 4294901760
        %1991 = vmatmul.mubr.f32.gmra.mrb[0].mxu0 %v1990
        %v1992 = vpop.f32.mrb[0].mxu0
        %v1993 = vadd.f32 %v1800, %v1992
        %v1994 = vpop.f32.mrb[0].mxu0
        %v1995 = vadd.f32 %v1802, %v1994
        %1996 = vmatprep.mubr.f32.mxu0 0.0
        %v1997 = vand.u32 %v644, 4294901760
        %1998 = vmatmul.mubr.f32.gmra.mrb[0].mxu0 %v1997
        %v1999 = vpop.f32.mrb[0].mxu0
        %v2000 = vadd.f32 %v1807, %v1999
        %v2001 = vpop.f32.mrb[0].mxu0
        %v2002 = vadd.f32 %v1809, %v2001
        %2003 = vmatprep.mubr.f32.mxu0 0.0
        %v2004 = vand.u32 %v647, 4294901760
        %2005 = vmatmul.mubr.f32.gmra.mrb[0].mxu0 %v2004
        %v2006 = vpop.f32.mrb[0].mxu0
        %v2007 = vadd.f32 %v1814, %v2006
        %v2008 = vpop.f32.mrb[0].mxu0
        %v2009 = vadd.f32 %v1816, %v2008
        %2010 = vmatprep.mubr.f32.mxu0 0.0
        %v2011 = vand.u32 %v650, 4294901760
        %2012 = vmatmul.mubr.f32.gmra.mrb[0].mxu0 %v2011
        %v2013 = vpop.f32.mrb[0].mxu0
        %v2014 = vadd.f32 %v1821, %v2013
        %v2015 = vpop.f32.mrb[0].mxu0
        %v2016 = vadd.f32 %v1823, %v2015
        %2017 = vmatprep.mubr.f32.mxu0 0.0
        %v2018 = vand.u32 %v653, 4294901760
        %2019 = vmatmul.mubr.f32.gmra.mrb[0].mxu0 %v2018
        %v2020 = vpop.f32.mrb[0].mxu0
        %v2021 = vadd.f32 %v1828, %v2020
        %v2022 = vpop.f32.mrb[0].mxu0
        %v2023 = vadd.f32 %v1830, %v2022
        %2024 = vmatprep.mubr.f32.mxu0 0.0
        %v2025 = vand.u32 %v656, 4294901760
        %2026 = vmatmul.mubr.f32.gmra.mrb[0].mxu0 %v2025
        %v2027 = vpop.f32.mrb[0].mxu0
        %v2028 = vadd.f32 %v1835, %v2027
        %v2029 = vpop.f32.mrb[0].mxu0
        %v2030 = vadd.f32 %v1837, %v2029
        %2031 = vmatprep.mubr.f32.mxu0 0.0
        %v2032 = vand.u32 %v659, 4294901760
        %2033 = vmatmul.mubr.f32.gmra.mrb[0].mxu0 %v2032
        %v2034 = vpop.f32.mrb[0].mxu0
        %v2035 = vadd.f32 %v1842, %v2034
        %v2036 = vpop.f32.mrb[0].mxu0
        %v2037 = vadd.f32 %v1844, %v2036
        %2038 = vmatprep.mubr.f32.mxu0 0.0
        %v2039 = vand.u32 %v662, 4294901760
        %2040 = vmatmul.mubr.f32.gmra.mrb[0].mxu0 %v2039
        %v2041 = vpop.f32.mrb[0].mxu0
        %v2042 = vadd.f32 %v1849, %v2041
        %v2043 = vpop.f32.mrb[0].mxu0
        %v2044 = vadd.f32 %v1851, %v2043
        %2045 = vdwg.mxu0
        %v2047 = vlaneseq
        %v2048 = vshrl.u32 %v2047, 7
        %v2049 = vsub.s32 0, %v2048
        %v2050 = vrot.slane %v374, %v2049
        %v2051 = vlaneseq
        %v2052 = vshrl.u32 %v2051, 7
        %v2053 = vsub.s32 1, %v2052
        %v2054 = vrot.slane %v374, %v2053
        %v2057 = vmul.f32 %v1937, %v2050
        %v2058 = vmul.f32 %v1939, %v2054
        %v2059 = vmul.f32 %v1944, %v2050
        %v2060 = vmul.f32 %v1946, %v2054
        %v2061 = vmul.f32 %v1951, %v2050
        %v2062 = vmul.f32 %v1953, %v2054
        %v2063 = vmul.f32 %v1958, %v2050
        %v2064 = vmul.f32 %v1960, %v2054
        %v2065 = vmul.f32 %v1965, %v2050
        %v2066 = vmul.f32 %v1967, %v2054
        %v2067 = vmul.f32 %v1972, %v2050
        %v2068 = vmul.f32 %v1974, %v2054
        %v2069 = vmul.f32 %v1979, %v2050
        %v2070 = vmul.f32 %v1981, %v2054
        %v2071 = vmul.f32 %v1986, %v2050
        %v2072 = vmul.f32 %v1988, %v2054
        %v2073 = vmul.f32 %v1993, %v2050
        %v2074 = vmul.f32 %v1995, %v2054
        %v2075 = vmul.f32 %v2000, %v2050
        %v2076 = vmul.f32 %v2002, %v2054
        %v2077 = vmul.f32 %v2007, %v2050
        %v2078 = vmul.f32 %v2009, %v2054
        %v2079 = vmul.f32 %v2014, %v2050
        %v2080 = vmul.f32 %v2016, %v2054
        %v2081 = vmul.f32 %v2021, %v2050
        %v2082 = vmul.f32 %v2023, %v2054
        %v2083 = vmul.f32 %v2028, %v2050
        %v2084 = vmul.f32 %v2030, %v2054
        %v2085 = vmul.f32 %v2035, %v2050
        %v2086 = vmul.f32 %v2037, %v2054
        %v2087 = vmul.f32 %v2042, %v2050
        %v2088 = vmul.f32 %v2044, %v2054
        %s2089 = smul.u32 %s23, 256
        %v2090 = vlaneseq
        %v2091 = vand.u32 %v2090, 127
        %v2092 = vadd.s32 %v2091, 128
        %v2093 = vstv %s2089
        %v2094 = vadd.s32 %v2093, %v2091
        %v2095 = vadd.s32 %v2093, %v2092
        %2096 = vset.pattern.permute.xlu0 0
        %2097 = vperm.xlu0 %2096, %v358
        %v2098 = vpop.permute.xlu0 %2097
        %2099 = vset.pattern.permute.xlu0 0
        %2100 = vperm.xlu0 %2099, %v359
        %v2101 = vpop.permute.xlu0 %2100
        %2102 = vset.pattern.permute.xlu0 0
        %2103 = vperm.xlu0 %2102, %v360
        %v2104 = vpop.permute.xlu0 %2103
        %2105 = vset.pattern.permute.xlu0 0
        %2106 = vperm.xlu0 %2105, %v361
        %v2107 = vpop.permute.xlu0 %2106
        %2108 = vset.pattern.permute.xlu0 0
        %2109 = vperm.xlu0 %2108, %v362
        %v2110 = vpop.permute.xlu0 %2109
        %2111 = vset.pattern.permute.xlu0 0
        %2112 = vperm.xlu0 %2111, %v363
        %v2113 = vpop.permute.xlu0 %2112
        %2114 = vset.pattern.permute.xlu0 0
        %2115 = vperm.xlu0 %2114, %v364
        %v2116 = vpop.permute.xlu0 %2115
        %2117 = vset.pattern.permute.xlu0 0
        %2118 = vperm.xlu0 %2117, %v365
        %v2119 = vpop.permute.xlu0 %2118
        %2120 = vset.pattern.permute.xlu0 0
        %2121 = vperm.xlu0 %2120, %v366
        %v2122 = vpop.permute.xlu0 %2121
        %2123 = vset.pattern.permute.xlu0 0
        %2124 = vperm.xlu0 %2123, %v367
        %v2125 = vpop.permute.xlu0 %2124
        %2126 = vset.pattern.permute.xlu0 0
        %2127 = vperm.xlu0 %2126, %v368
        %v2128 = vpop.permute.xlu0 %2127
        %2129 = vset.pattern.permute.xlu0 0
        %2130 = vperm.xlu0 %2129, %v369
        %v2131 = vpop.permute.xlu0 %2130
        %2132 = vset.pattern.permute.xlu0 0
        %2133 = vperm.xlu0 %2132, %v370
        %v2134 = vpop.permute.xlu0 %2133
        %2135 = vset.pattern.permute.xlu0 0
        %2136 = vperm.xlu0 %2135, %v371
        %v2137 = vpop.permute.xlu0 %2136
        %2138 = vset.pattern.permute.xlu0 0
        %2139 = vperm.xlu0 %2138, %v372
        %v2140 = vpop.permute.xlu0 %2139
        %2141 = vset.pattern.permute.xlu0 0
        %2142 = vperm.xlu0 %2141, %v373
        %v2143 = vpop.permute.xlu0 %2142
        %vm2144 = vcmp.eq.s32.totalorder %v2098, %v2094
        %vm2145 = vcmp.eq.s32.totalorder %v2098, %v2095
        %vm2146 = vcmp.eq.s32.totalorder %v2101, %v2094
        %vm2147 = vcmp.eq.s32.totalorder %v2101, %v2095
        %vm2148 = vcmp.eq.s32.totalorder %v2104, %v2094
        %vm2149 = vcmp.eq.s32.totalorder %v2104, %v2095
        %vm2150 = vcmp.eq.s32.totalorder %v2107, %v2094
        %vm2151 = vcmp.eq.s32.totalorder %v2107, %v2095
        %vm2152 = vcmp.eq.s32.totalorder %v2110, %v2094
        %vm2153 = vcmp.eq.s32.totalorder %v2110, %v2095
        %vm2154 = vcmp.eq.s32.totalorder %v2113, %v2094
        %vm2155 = vcmp.eq.s32.totalorder %v2113, %v2095
        %vm2156 = vcmp.eq.s32.totalorder %v2116, %v2094
        %vm2157 = vcmp.eq.s32.totalorder %v2116, %v2095
        %vm2158 = vcmp.eq.s32.totalorder %v2119, %v2094
        %vm2159 = vcmp.eq.s32.totalorder %v2119, %v2095
        %vm2160 = vcmp.eq.s32.totalorder %v2122, %v2094
        %vm2161 = vcmp.eq.s32.totalorder %v2122, %v2095
        %vm2162 = vcmp.eq.s32.totalorder %v2125, %v2094
        %vm2163 = vcmp.eq.s32.totalorder %v2125, %v2095
        %vm2164 = vcmp.eq.s32.totalorder %v2128, %v2094
        %vm2165 = vcmp.eq.s32.totalorder %v2128, %v2095
        %vm2166 = vcmp.eq.s32.totalorder %v2131, %v2094
        %vm2167 = vcmp.eq.s32.totalorder %v2131, %v2095
        %vm2168 = vcmp.eq.s32.totalorder %v2134, %v2094
        %vm2169 = vcmp.eq.s32.totalorder %v2134, %v2095
        %vm2170 = vcmp.eq.s32.totalorder %v2137, %v2094
        %vm2171 = vcmp.eq.s32.totalorder %v2137, %v2095
        %vm2172 = vcmp.eq.s32.totalorder %v2140, %v2094
        %vm2173 = vcmp.eq.s32.totalorder %v2140, %v2095
        %vm2174 = vcmp.eq.s32.totalorder %v2143, %v2094
        %vm2175 = vcmp.eq.s32.totalorder %v2143, %v2095
        %v2176 = vsub.f32 %v2057, 9.0
        %v2177 = vsub.f32 %v2058, 9.0
        %v2178 = vsub.f32 %v2059, 9.0
        %v2179 = vsub.f32 %v2060, 9.0
        %v2180 = vsub.f32 %v2061, 9.0
        %v2181 = vsub.f32 %v2062, 9.0
        %v2182 = vsub.f32 %v2063, 9.0
        %v2183 = vsub.f32 %v2064, 9.0
        %v2184 = vsub.f32 %v2065, 9.0
        %v2185 = vsub.f32 %v2066, 9.0
        %v2186 = vsub.f32 %v2067, 9.0
        %v2187 = vsub.f32 %v2068, 9.0
        %v2188 = vsub.f32 %v2069, 9.0
        %v2189 = vsub.f32 %v2070, 9.0
        %v2190 = vsub.f32 %v2071, 9.0
        %v2191 = vsub.f32 %v2072, 9.0
        %v2192 = vsub.f32 %v2073, 9.0
        %v2193 = vsub.f32 %v2074, 9.0
        %v2194 = vsub.f32 %v2075, 9.0
        %v2195 = vsub.f32 %v2076, 9.0
        %v2196 = vsub.f32 %v2077, 9.0
        %v2197 = vsub.f32 %v2078, 9.0
        %v2198 = vsub.f32 %v2079, 9.0
        %v2199 = vsub.f32 %v2080, 9.0
        %v2200 = vsub.f32 %v2081, 9.0
        %v2201 = vsub.f32 %v2082, 9.0
        %v2202 = vsub.f32 %v2083, 9.0
        %v2203 = vsub.f32 %v2084, 9.0
        %v2204 = vsub.f32 %v2085, 9.0
        %v2205 = vsub.f32 %v2086, 9.0
        %v2206 = vsub.f32 %v2087, 9.0
        %v2207 = vsub.f32 %v2088, 9.0
        %v2208 = vsel %vm2144, %v2176, %v2057
        %v2209 = vsel %vm2145, %v2177, %v2058
        %v2210 = vsel %vm2146, %v2178, %v2059
        %v2211 = vsel %vm2147, %v2179, %v2060
        %v2212 = vsel %vm2148, %v2180, %v2061
        %v2213 = vsel %vm2149, %v2181, %v2062
        %v2214 = vsel %vm2150, %v2182, %v2063
        %v2215 = vsel %vm2151, %v2183, %v2064
        %v2216 = vsel %vm2152, %v2184, %v2065
        %v2217 = vsel %vm2153, %v2185, %v2066
        %v2218 = vsel %vm2154, %v2186, %v2067
        %v2219 = vsel %vm2155, %v2187, %v2068
        %v2220 = vsel %vm2156, %v2188, %v2069
        %v2221 = vsel %vm2157, %v2189, %v2070
        %v2222 = vsel %vm2158, %v2190, %v2071
        %v2223 = vsel %vm2159, %v2191, %v2072
        %v2224 = vsel %vm2160, %v2192, %v2073
        %v2225 = vsel %vm2161, %v2193, %v2074
        %v2226 = vsel %vm2162, %v2194, %v2075
        %v2227 = vsel %vm2163, %v2195, %v2076
        %v2228 = vsel %vm2164, %v2196, %v2077
        %v2229 = vsel %vm2165, %v2197, %v2078
        %v2230 = vsel %vm2166, %v2198, %v2079
        %v2231 = vsel %vm2167, %v2199, %v2080
        %v2232 = vsel %vm2168, %v2200, %v2081
        %v2233 = vsel %vm2169, %v2201, %v2082
        %v2234 = vsel %vm2170, %v2202, %v2083
        %v2235 = vsel %vm2171, %v2203, %v2084
        %v2236 = vsel %vm2172, %v2204, %v2085
        %v2237 = vsel %vm2173, %v2205, %v2086
        %v2238 = vsel %vm2174, %v2206, %v2087
        %v2239 = vsel %vm2175, %v2207, %v2088
        %2240 = vst [vmem:[%s305] sm:$0xff] %v2208
        %2241 = vst [vmem:[%s305 + $0x8] sm:$0xff] %v2209
        %2242 = vst [vmem:[%s305 + $0x10] sm:$0xff] %v2210
        %2243 = vst [vmem:[%s305 + $0x18] sm:$0xff] %v2211
        %2244 = vst [vmem:[%s305 + $0x20] sm:$0xff] %v2212
        %2245 = vst [vmem:[%s305 + $0x28] sm:$0xff] %v2213
        %2246 = vst [vmem:[%s305 + $0x30] sm:$0xff] %v2214
        %2247 = vst [vmem:[%s305 + $0x38] sm:$0xff] %v2215
        %2248 = vst [vmem:[%s305 + $0x40] sm:$0xff] %v2216
        %2249 = vst [vmem:[%s305 + $0x48] sm:$0xff] %v2217
        %2250 = vst [vmem:[%s305 + $0x50] sm:$0xff] %v2218
        %2251 = vst [vmem:[%s305 + $0x58] sm:$0xff] %v2219
        %2252 = vst [vmem:[%s305 + $0x60] sm:$0xff] %v2220
        %2253 = vst [vmem:[%s305 + $0x68] sm:$0xff] %v2221
        %2254 = vst [vmem:[%s305 + $0x70] sm:$0xff] %v2222
        %2255 = vst [vmem:[%s305 + $0x78] sm:$0xff] %v2223
        %2256 = vst [vmem:[%s305 + $0x80] sm:$0xff] %v2224
        %2257 = vst [vmem:[%s305 + $0x88] sm:$0xff] %v2225
        %2258 = vst [vmem:[%s305 + $0x90] sm:$0xff] %v2226
        %2259 = vst [vmem:[%s305 + $0x98] sm:$0xff] %v2227
        %2260 = vst [vmem:[%s305 + $0xa0] sm:$0xff] %v2228
        %2261 = vst [vmem:[%s305 + $0xa8] sm:$0xff] %v2229
        %2262 = vst [vmem:[%s305 + $0xb0] sm:$0xff] %v2230
        %2263 = vst [vmem:[%s305 + $0xb8] sm:$0xff] %v2231
        %2264 = vst [vmem:[%s305 + $0xc0] sm:$0xff] %v2232
        %2265 = vst [vmem:[%s305 + $0xc8] sm:$0xff] %v2233
        %2266 = vst [vmem:[%s305 + $0xd0] sm:$0xff] %v2234
        %2267 = vst [vmem:[%s305 + $0xd8] sm:$0xff] %v2235
        %2268 = vst [vmem:[%s305 + $0xe0] sm:$0xff] %v2236
        %2269 = vst [vmem:[%s305 + $0xe8] sm:$0xff] %v2237
        %2270 = vst [vmem:[%s305 + $0xf0] sm:$0xff] %v2238
        %2271 = vst [vmem:[%s305 + $0xf8] sm:$0xff] %v2239
        %s2272 = sand.u32 %s144, 1
        %s2273 = scalar_lea.sflag [#allocation4], %s2272
        %s2274 = sand.u32 %s144, 1
        %s2275 = smul.addr %s2274, 256
        %s2276 = scalar_lea.vmem [#allocation3], %s2275
        // Predicated region
        $region60: #{tpu_custom_call.1} parent=54 // pred_check
          %p2277 = pneg %p154
        $region61: #{tpu_custom_call.1} parent=54 // pred_check_branch
          %2279 = sbr.rel (%p2277) target = $region63
        $region62: #{tpu_custom_call.1} parent=54 // pred_region
          %s2280 = smul.u32 16, %s22
          %s2281 = smul.u32 2, %s23
          %s2283 = ssub.s32 4096, 4096
          %2284 = vsyncadd %s2273, %s2283
          %s2285 = smul.addr %s2280, 4
          %s2286 = sadd.s32 %s2281, %s2285
          %s2287 = smul.addr %s2286, 128
          %s2288 = scalar_lea.hbm %s4, %s2287
          %s2289 = sshll.u32 %s2276, 4
          %s2290 = int_to_ptr.vmem [resolvable:$true] %s2289
          %2295 = dma.vmem_to_hbm [thread:$0]  %s2290, 4096, %s2288, %s2273, 256, 512, 16
        $region63: #{tpu_custom_call.1} parent=54 // pred_fallthru
          _
      $region55: #{tpu_custom_call.1} parent=5 // pred_fallthru
        _
      %p2296 = scmp.le.s32.totalorder 2, %s13
      // Predicated region
      $region64: #{tpu_custom_call.1} parent=5 // pred_check
        %p2297 = pneg %p2296
      $region65: #{tpu_custom_call.1} parent=5 // pred_check_branch
        %2299 = sbr.rel (%p2297) target = $region67
      $region66: #{tpu_custom_call.1} parent=5 // pred_region
        %s2300 = ssub.s32 %s13, 2
        // Predicated region
        $region68: #{tpu_custom_call.1} parent=66 // pred_check
          %p2301 = pneg %p160
        $region69: #{tpu_custom_call.1} parent=66 // pred_check_branch
          %2303 = sbr.rel (%p2301) target = $region71
        $region70: #{tpu_custom_call.1} parent=66 // pred_region
          %s2304 = sand.u32 %s145, 1
          %s2305 = scalar_lea.sflag [#allocation4], %s2304
          %s2306 = sand.u32 %s145, 1
          %s2307 = smul.addr %s2306, 256
          %s2308 = scalar_lea.vmem [#allocation3], %s2307
          %2309 = dma.done %s2305, 4096
        $region71: #{tpu_custom_call.1} parent=66 // pred_fallthru
          _
      $region67: #{tpu_custom_call.1} parent=5 // pred_fallthru
        _
    $region6: #{tpu_custom_call.1} parent=1 // loop_footer
      %s17 = sadd.s32 1, %s13
    $region7: #{tpu_custom_call.1} parent=1 // loop_footer_branch
      %12 = sbr.rel target = $region3
    $region8: #{tpu_custom_call.1} parent=1 // loop_exit
      _
    %2310 = vsyncpa [#allocation4], 1
    %s2311 = scalar_lea.sflag [#allocation4], 1
    %2312 = vsyncpa %s2311, 1

</llo_original>
